<compile_context>
chip_gen: v7x
topology: tpu7x:2x2x1
jax: 0.10.0
libtpu: 0.0.40
codegen_flags: <defaults>
</compile_context>

<pallas_src>
import functools
import math

import jax
import jax.numpy as jnp
from jax.experimental import pallas as pl
from jax.experimental.pallas import tpu as pltpu


def _round_up(x, m):
    return ((x + m - 1) // m) * m


def _maybe_cast(v, dtype):
    if dtype is None or v.dtype == jnp.dtype(dtype):
        return v
    return v.astype(dtype)


def _tensorcores_per_chip():
    """Best-effort TensorCores-per-chip; only used to gate the megacore batch
    split (splitting on single-core v5e/v6e just halves MXU rows for nothing)."""
    try:
        kind = jax.devices()[0].device_kind.lower()
    except Exception:
        return 1
    # v7x (and v4/v5p) pack two TensorCores per chip; v5e/v6e have one.
    if any(tag in kind for tag in ("v7", "7x", "v4", "v5p")):
        return 2
    return 1


def _gcn_kernel(x_ref, w_ref, adj_ref, o_ref, *scratch, adj_first,
                compute_dtype, use_ax_cache, f_axis):
    # x_ref:   (TB, K, F_in)  TB batch elements per grid step
    # w_ref:   (F_in, TFO)    current F_out tile of the weight (grid-invariant
    #                         when TFO == F_out, so it is DMA'd exactly once)
    # adj_ref: (K, K)         shared learnable adjacency (grid-invariant)
    # o_ref:   (TB, K, TFO)
    # scratch: optionally one (TB, K, F_in) f32 VMEM buffer caching adj @ x
    tb, k, f_in = x_ref.shape
    tfo = o_ref.shape[-1]

    # In-kernel cast (VPU, hidden under DMA/MXU) instead of a wrapper astype
    # that would re-read and re-write the full array in HBM.
    w = _maybe_cast(w_ref[...], compute_dtype)

    if adj_first:
        # (adj @ x) @ W  -- cheaper when F_in < F_out tile.
        def compute_ax():
            x = _maybe_cast(x_ref[...], compute_dtype)
            adj = _maybe_cast(adj_ref[...], compute_dtype)
            adj_b = jnp.broadcast_to(adj, (tb, k, k))
            # NOTE: this lowers to TB small (KxK)@(KxF_in) matmuls; folding the
            # batch into the lane dim would need a (K, B, F) HBM layout (an
            # extra wrapper transpose pass) and the kernel is HBM-bound, so we
            # keep the batched einsum.
            return jnp.einsum("bkj,bjf->bkf", adj_b, x,
                              preferred_element_type=jnp.float32)

        if use_ax_cache:
            ax_ref, = scratch
            # adj@x does not depend on the F_out tile: compute once per batch
            # tile (first f step) and reuse for every f tile. Valid because the
            # f axis is "arbitrary" (never sharded across cores).
            @pl.when(pl.program_id(f_axis) == 0)
            def _():
                ax_ref[...] = compute_ax()
            ax = ax_ref[...]
        else:
            ax = compute_ax()
        # Keep the intermediate in f32: no extra bf16 rounding between matmuls.
        out = jnp.dot(ax.reshape(tb * k, f_in), w,
                      preferred_element_type=jnp.float32).reshape(tb, k, tfo)
    else:
        # adj @ (x @ W)  -- original order, cheaper when F_out tile <= F_in.
        x = _maybe_cast(x_ref[...], compute_dtype)
        xw = jnp.dot(x.reshape(tb * k, f_in), w,
                     preferred_element_type=jnp.float32).reshape(tb, k, tfo)
        adj = _maybe_cast(adj_ref[...], compute_dtype)
        adj_b = jnp.broadcast_to(adj, (tb, k, k))
        out = jnp.einsum("bkj,bjf->bkf", adj_b, xw,
                         preferred_element_type=jnp.float32)

    o_ref[...] = out.astype(o_ref.dtype)


def graph_convolution(x, weight, adj, *, compute_dtype=None, out_dtype=None,
                      batch_tile=None, fout_tile=None, pad_fout_to_lanes=False,
                      max_weight_block_bytes=3 << 20, interpret=False):
    """x: (B, K, F_in), weight: (F_in, F_out), adj: (K, K) -> (B, K, F_out).

    compute_dtype: optional narrow MXU operand dtype (e.g. jnp.bfloat16); cast
        happens *inside* the kernel, accumulation/intermediate stay f32.
    out_dtype: output dtype (default x.dtype); bf16 halves output writeback.
    pad_fout_to_lanes: opt-in zero-pad of F_out to a multiple of 128 for
        unmasked lane-dense stores; OFF by default because the doubled
        writeback + post-kernel slice usually costs more than masked stores.
    """
    B, K, F_in = x.shape
    F_in_w, F_out = weight.shape
    assert F_in == F_in_w
    assert adj.shape == (K, K)
    out_dtype = jnp.dtype(out_dtype if out_dtype is not None else x.dtype)

    # NOTE: the in-kernel (TB, K, F_in) -> (TB*K, F_in) reshape is a free view
    # only when K is a multiple of the sublane packing (8 for f32, 16 for
    # bf16); other K still works but pays a VMEM relayout per tile.

    # Optional lane-dense output (padding sliced off before returning).
    F_out_eff = _round_up(F_out, 128) if pad_fout_to_lanes else F_out
    if F_out_eff != F_out:
        weight = jnp.pad(weight, ((0, 0), (0, F_out_eff - F_out)))

    # --- F_out tiling --------------------------------------------------------
    w_bytes = F_in * F_out_eff * weight.dtype.itemsize
    if fout_tile is not None:
        assert fout_tile % 128 == 0, "fout_tile must be a multiple of 128 (lanes)"
        TFO = min(fout_tile, F_out_eff)
    elif w_bytes <= max_weight_block_bytes:
        TFO = F_out_eff           # whole weight: grid-invariant, DMA'd once
    else:
        TFO = min(512, _round_up(F_out_eff, 128))
        if TFO >= F_out_eff:
            TFO = F_out_eff
    nf = pl.cdiv(F_out_eff, TFO)

    # Fewer FLOPs per tile: extra term is K*K*F_in (adj first) vs K*K*TFO.
    adj_first = F_in < TFO
    # Grid order: the larger of {x, weight} keeps a constant block index in the
    # inner loop, so it is read from HBM exactly once.
    x_bytes = B * K * F_in * x.dtype.itemsize
    f_inner = (nf == 1) or (x_bytes >= w_bytes)
    f_axis = 1 if f_inner else 0
    use_ax_cache = adj_first and f_inner and nf > 1

    # --- batch tiling --------------------------------------------------------
    if batch_tile is not None:
        TB = int(batch_tile)
        assert TB >= 1
    else:
        # Fold TB batch elements so TB*K approaches 256 MXU rows.
        TB = max(1, min(B, pl.cdiv(256, K)))

        def residency(tb):
            # Pallas double-buffers every operand block by default (including
            # the grid-invariant weight/adj blocks), plus the optional scratch.
            return (2 * tb * K * F_in * x.dtype.itemsize
                    + 2 * tb * K * TFO * out_dtype.itemsize
                    + 2 * F_in * TFO * weight.dtype.itemsize
                    + 2 * K * K * adj.dtype.itemsize
                    + (tb * K * F_in * 4 if use_ax_cache else 0))

        budget = 10 << 20   # fits v5e's 16 MiB default scoped VMEM; << v6e/v7x
        while TB > 1 and residency(TB) > budget:
            TB = max(1, TB // 2)

        # Megacore: only split the batch if the chip really has >1 TensorCore
        # (v7x); on v5e/v6e a split just adds grid steps and halves MXU rows.
        cores = _tensorcores_per_chip()
        while cores > 1 and pl.cdiv(B, TB) * nf < cores and TB > 1:
            TB = max(1, TB // 2)

    nb = pl.cdiv(B, TB)   # no wrapper batch padding: Pallas masks the ragged edge

    if f_inner:
        grid = (nb, nf)
        x_map = lambda b, f: (b, 0, 0)
        w_map = lambda b, f: (0, f)
        a_map = lambda b, f: (0, 0)
        o_map = lambda b, f: (b, 0, f)
        # f must be "arbitrary" so the adj@x cache guard is valid under
        # megacore sharding (only the batch axis may be split across cores).
        dims = ("parallel", "arbitrary")
    else:
        grid = (nf, nb)
        x_map = lambda f, b: (b, 0, 0)
        w_map = lambda f, b: (0, f)
        a_map = lambda f, b: (0, 0)
        o_map = lambda f, b: (b, 0, f)
        dims = ("parallel", "parallel")

    kernel = functools.partial(
        _gcn_kernel, adj_first=adj_first, compute_dtype=compute_dtype,
        use_ax_cache=use_ax_cache, f_axis=f_axis)
    scratch_shapes = ([pltpu.VMEM((TB, K, F_in), jnp.float32)]
                      if use_ax_cache else [])

    out = pl.pallas_call(
        kernel,
        out_shape=jax.ShapeDtypeStruct((B, K, F_out_eff), out_dtype),
        grid_spec=pltpu.PrefetchScalarGridSpec(
            num_scalar_prefetch=0,
            grid=grid,
            in_specs=[
                pl.BlockSpec((TB, K, F_in), x_map),
                pl.BlockSpec((F_in, TFO), w_map),
                pl.BlockSpec((K, K), a_map),
            ],
            out_specs=pl.BlockSpec((TB, K, TFO), o_map),
            scratch_shapes=scratch_shapes,
        ),
        compiler_params=pltpu.CompilerParams(dimension_semantics=dims),
        interpret=interpret,
    )(x, weight, adj)

    if F_out_eff != F_out:
        # Opt-in lane padding only: this slice is an extra HBM pass.
        out = out[:, :, :F_out]
    return out


if __name__ == "__main__":
    key = jax.random.PRNGKey(0)
    k_x, k_w, k_a, k_x2, k_w2, k_x3 = jax.random.split(key, 6)
    HI = jax.lax.Precision.HIGHEST

    def reference(xv, wv, av):
        return jnp.matmul(av, jnp.matmul(xv, wv, precision=HI), precision=HI)

    # --- 1) Typical small GCN shapes: single grid-invariant weight block. ----
    B, K, F_in, F_out = 16, 16, 32, 64
    stdv = 1.0 / math.sqrt(F_out)   # mirrors reset(): uniform(-stdv, stdv)
    weight = jax.random.uniform(k_w, (F_in, F_out), jnp.float32, -stdv, stdv)
    adj = jax.random.uniform(k_a, (K, K), jnp.float32, -stdv, stdv)
    x = jax.random.normal(k_x, (B, K, F_in), jnp.float32)
    ref = reference(x, weight, adj)

    out = jax.block_until_ready(graph_convolution(x, weight, adj))
    assert out.shape == (B, K, F_out) and out.dtype == jnp.float32
    assert jnp.allclose(out, ref, atol=2e-3, rtol=2e-3)

    # bf16 MXU operands (cast in-kernel), f32 accumulation + f32 intermediate.
    out_bf16 = jax.block_until_ready(
        graph_convolution(x, weight, adj, compute_dtype=jnp.bfloat16))
    assert out_bf16.dtype == jnp.float32
    assert jnp.allclose(out_bf16, ref, atol=5e-2, rtol=5e-2)

    # Opt-in lane-dense output path (padded weight, sliced output).
    out_pad = jax.block_until_ready(
        graph_convolution(x, weight, adj, pad_fout_to_lanes=True))
    assert out_pad.shape == (B, K, F_out)
    assert jnp.allclose(out_pad, ref, atol=2e-3, rtol=2e-3)

    # --- 2) Tiled F_out with the adj@x VMEM cache (f inner, "arbitrary"). ----
    B2, F_out2 = 32, 256
    stdv2 = 1.0 / math.sqrt(F_out2)
    w2 = jax.random.uniform(k_w2, (F_in, F_out2), jnp.float32, -stdv2, stdv2)
    x2 = jax.random.normal(k_x2, (B2, K, F_in), jnp.float32)
    ref2 = reference(x2, w2, adj)
    out2 = jax.block_until_ready(graph_convolution(
        x2, w2, adj, batch_tile=8, fout_tile=128, max_weight_block_bytes=1))
    assert out2.shape == (B2, K, F_out2)
    assert jnp.allclose(out2, ref2, atol=2e-3, rtol=2e-3)

    # --- 3) Tiled F_out, f-outer grid order, ragged batch (B % TB != 0). -----
    B3 = 5
    x3 = jax.random.normal(k_x3, (B3, K, F_in), jnp.float32)
    ref3 = reference(x3, w2, adj)
    out3 = jax.block_until_ready(graph_convolution(
        x3, w2, adj, batch_tile=2, fout_tile=128, max_weight_block_bytes=1))
    assert out3.shape == (B3, K, F_out2)
    assert jnp.allclose(out3, ref3, atol=2e-3, rtol=2e-3)

    print("KERNEL_OK")
</pallas_src>

<mosaic_0001>
module attributes {stable_mosaic.version = 11 : i64} {
  func.func @_gcn_kernel(%arg0: i32, %arg1: i32, %arg2: memref<16x16x32xf32, #tpu.memory_space<vmem>>, %arg3: memref<32x64xf32, #tpu.memory_space<vmem>>, %arg4: memref<16x16xf32, #tpu.memory_space<vmem>>, %arg5: memref<16x16x64xf32, #tpu.memory_space<vmem>>) attributes {dimension_semantics = [#tpu.dimension_semantics<parallel>, #tpu.dimension_semantics<arbitrary>], iteration_bounds = array<i64: 1, 1>, scalar_prefetch = 0 : i64, scratch_operands = 0 : i64, tpu.core_type = #tpu.core_type<tc>, window_params = [{transform_indices = @transform_0, window_bounds = array<i64: 16, 16, 32>}, {transform_indices = @transform_1, window_bounds = array<i64: 32, 64>}, {pipeline_mode = #tpu.pipeline_mode<synchronous>, transform_indices = @transform_2, window_bounds = array<i64: 16, 16>}, {transform_indices = @transform_3, window_bounds = array<i64: 16, 16, 64>}]} {
    %c0 = arith.constant 0 : index
    %c0_0 = arith.constant 0 : index
    %0 = vector.load %arg3[%c0, %c0_0] : memref<32x64xf32, #tpu.memory_space<vmem>>, vector<32x64xf32>
    %c0_1 = arith.constant 0 : index
    %c0_2 = arith.constant 0 : index
    %c0_3 = arith.constant 0 : index
    %1 = vector.load %arg2[%c0_1, %c0_2, %c0_3] : memref<16x16x32xf32, #tpu.memory_space<vmem>>, vector<16x16x32xf32>
    %c0_4 = arith.constant 0 : index
    %c0_5 = arith.constant 0 : index
    %2 = vector.load %arg4[%c0_4, %c0_5] : memref<16x16xf32, #tpu.memory_space<vmem>>, vector<16x16xf32>
    %3 = vector.shape_cast %2 : vector<16x16xf32> to vector<1x16x16xf32>
    %4 = vector.broadcast %3 : vector<1x16x16xf32> to vector<16x16x16xf32>
    "tpu.trace_start"() <{level = 10 : i32, message = "bkj,bjf->bkf"}> : () -> ()
    %cst = arith.constant dense<0.000000e+00> : vector<16x16x32xf32>
    %5 = tpu.matmul %4, %1, %cst {dimension_numbers = #tpu.dot_dimension_numbers<[2], [1], [1], [2], [0, 0, 0, 1, 1, 2], [0], [0]>} : vector<16x16x16xf32>, vector<16x16x32xf32>, vector<16x16x32xf32> -> vector<16x16x32xf32>
    "tpu.trace_stop"() : () -> ()
    %6 = vector.shape_cast %5 : vector<16x16x32xf32> to vector<256x32xf32>
    %cst_6 = arith.constant dense<0.000000e+00> : vector<256x64xf32>
    %7 = tpu.matmul %6, %0, %cst_6 {dimension_numbers = #tpu.dot_dimension_numbers<[1], [0], [0], [1], [0, 0, 1, 1], [], []>} : vector<256x32xf32>, vector<32x64xf32>, vector<256x64xf32> -> vector<256x64xf32>
    %8 = vector.shape_cast %7 : vector<256x64xf32> to vector<16x16x64xf32>
    %c0_7 = arith.constant 0 : index
    %c0_8 = arith.constant 0 : index
    %c0_9 = arith.constant 0 : index
    %9 = vector.load %arg5[%c0_7, %c0_8, %c0_9] : memref<16x16x64xf32, #tpu.memory_space<vmem>>, vector<16x16x64xf32>
    tpu.vector_store %arg5[%c0_7, %c0_8, %c0_9], %8 {strides = array<i32>} : memref<16x16x64xf32, #tpu.memory_space<vmem>>, vector<16x16x64xf32>,
    return
  }
  func.func @transform_0(%arg0: i32, %arg1: i32) -> (i32, i32, i32) {
    %c0_i32 = arith.constant 0 : i32
    %c0_i32_0 = arith.constant 0 : i32
    %c0_i32_1 = arith.constant 0 : i32
    return %arg0, %c0_i32, %c0_i32_0 : i32, i32, i32
  }
  func.func @transform_1(%arg0: i32, %arg1: i32) -> (i32, i32) {
    %c0_i32 = arith.constant 0 : i32
    %c0_i32_0 = arith.constant 0 : i32
    return %c0_i32, %arg1 : i32, i32
  }
  func.func @transform_2(%arg0: i32, %arg1: i32) -> (i32, i32) {
    %c0_i32 = arith.constant 0 : i32
    %c0_i32_0 = arith.constant 0 : i32
    %c0_i32_1 = arith.constant 0 : i32
    return %c0_i32, %c0_i32_0 : i32, i32
  }
  func.func @transform_3(%arg0: i32, %arg1: i32) -> (i32, i32, i32) {
    %c0_i32 = arith.constant 0 : i32
    %c0_i32_0 = arith.constant 0 : i32
    return %arg0, %c0_i32, %arg1 : i32, i32, i32
  }
}

</mosaic_0001>

<llo_original>
// kernel: tpu_custom_call.1
$region0: #{tpu_custom_call.1}
  #allocation0 [shape = 'u32[]', space=smem, size = 0x4, offset = 0x4, fixed_abs, tag = 'smem constant byte address 0x4 - core index']
  #allocation1 [shape = 'u32[144,128]{1,0:T(1,128)}', space=vmem, size = 0x12000, scoped, tag = 'internal scratch']
  %s0 = inlined_call_operand.hbm [shape: f32[16,16,32], index: 0, kind: input, shape index: {}]
  %s1 = inlined_call_operand.hbm [shape: f32[32,64], index: 1, kind: input, shape index: {}]
  %s2 = inlined_call_operand.hbm [shape: f32[16,16], index: 2, kind: input, shape index: {}]
  %s3 = inlined_call_operand.hbm [shape: f32[16,16,64], index: 3, kind: output, shape index: {}]
  %s4 = sld [smem:[#allocation0]]
  $region34: #{tpu_custom_call.1} parent=0
    _
  %s6 = ssub.s32 1, %s4
  %s7 = scalar_select 0, %s6, %s4
  $region1: #{tpu_custom_call.1} parent=0
    #allocation2 [shape = 'u8[131072]{0}', space=vmem, size = 0x20000, scoped, tag = 'input window, operand 0, single buffered']
    #allocation3 [shape = 's32[1]{0}', space=sflag, size = 0x4, scoped, tag = 'scoped memory for tpu_custom_call.1']
    #allocation4 [shape = 's32[1]{0}', space=sflag, size = 0x4, scoped, tag = 'scoped memory for tpu_custom_call.1']
    #allocation5 [shape = 'u8[16384]{0}', space=vmem, size = 0x4000, scoped, tag = 'input window, operand 1, single buffered']
    #allocation6 [shape = 's32[1]{0}', space=sflag, size = 0x4, scoped, tag = 'scoped memory for tpu_custom_call.1']
    #allocation7 [shape = 'u8[8192]{0}', space=vmem, size = 0x2000, scoped, tag = 'input window, operand 2, single buffered']
    #allocation8 [shape = 'u8[131072]{0}', space=vmem, size = 0x20000, scoped, tag = 'output window, operand 0, single buffered']
    %8 = vsyncpa [#allocation3], 0
    %9 = vsyncpa [#allocation6], 0
    %10 = vsyncpa [#allocation4], 0
    // Predicated region
    $region2: #{tpu_custom_call.1} parent=1 // pred_check
      _
    $region3: #{tpu_custom_call.1} parent=1 // pred_check_branch
      %12 = sbr.rel (0) target = $region5
    $region4: #{tpu_custom_call.1} parent=1 // pred_region
      %s14 = ssub.s32 4096, 4096
      %15 = vsyncadd [#allocation3], %s14
      %s16 = sshll.u32 [#allocation2], 4
      %s17 = int_to_ptr.vmem [resolvable:$true] %s16
      %22 = dma.hbm_to_vmem [thread:$0]  %s0, 4096, %s17, [#allocation3], 128, 128, 8
    $region5: #{tpu_custom_call.1} parent=1 // pred_fallthru
      _
    // Predicated region
    $region6: #{tpu_custom_call.1} parent=1 // pred_check
      _
    $region7: #{tpu_custom_call.1} parent=1 // pred_check_branch
      %24 = sbr.rel (0) target = $region9
    $region8: #{tpu_custom_call.1} parent=1 // pred_region
      %s26 = ssub.s32 512, 512
      %27 = vsyncadd [#allocation6], %s26
      %s28 = sshll.u32 [#allocation5], 4
      %s29 = int_to_ptr.vmem [resolvable:$true] %s28
      %34 = dma.hbm_to_vmem [thread:$0]  %s1, 512, %s29, [#allocation6], 128, 128, 8
    $region9: #{tpu_custom_call.1} parent=1 // pred_fallthru
      _
    // Predicated region
    $region10: #{tpu_custom_call.1} parent=1 // pred_check
      _
    $region11: #{tpu_custom_call.1} parent=1 // pred_check_branch
      %36 = sbr.rel (0) target = $region13
    $region12: #{tpu_custom_call.1} parent=1 // pred_region
      %s38 = ssub.s32 256, 256
      %39 = vsyncadd [#allocation6], %s38
      %s40 = sshll.u32 [#allocation7], 4
      %s41 = int_to_ptr.vmem [resolvable:$true] %s40
      %46 = dma.hbm_to_vmem [thread:$0]  %s2, 256, %s41, [#allocation6], 128, 128, 8
    $region13: #{tpu_custom_call.1} parent=1 // pred_fallthru
      _
    // Predicated region
    $region14: #{tpu_custom_call.1} parent=1 // pred_check
      _
    $region15: #{tpu_custom_call.1} parent=1 // pred_check_branch
      %48 = sbr.rel (0) target = $region17
    $region16: #{tpu_custom_call.1} parent=1 // pred_region
      %49 = dma.done [#allocation3], 4096
    $region17: #{tpu_custom_call.1} parent=1 // pred_fallthru
      _
    // Predicated region
    $region18: #{tpu_custom_call.1} parent=1 // pred_check
      _
    $region19: #{tpu_custom_call.1} parent=1 // pred_check_branch
      %51 = sbr.rel (0) target = $region21
    $region20: #{tpu_custom_call.1} parent=1 // pred_region
      %52 = dma.done [#allocation6], 512
    $region21: #{tpu_custom_call.1} parent=1 // pred_fallthru
      _
    // Predicated region
    $region22: #{tpu_custom_call.1} parent=1 // pred_check
      _
    $region23: #{tpu_custom_call.1} parent=1 // pred_check_branch
      %54 = sbr.rel (0) target = $region25
    $region24: #{tpu_custom_call.1} parent=1 // pred_region
      %55 = dma.done [#allocation6], 256
    $region25: #{tpu_custom_call.1} parent=1 // pred_fallthru
      _
    %v56 = vld [vmem:[#allocation5] sm:$0xff]
    %v57 = vld [vmem:[#allocation5 + $0x8] sm:$0xff]
    %v58 = vld [vmem:[#allocation5 + $0x10] sm:$0xff]
    %v59 = vld [vmem:[#allocation5 + $0x18] sm:$0xff]
    %v60 = vld [vmem:[#allocation2] sm:$0xff]
    %v61 = vld [vmem:[#allocation2 + $0x8] sm:$0xff]
    %v62 = vld [vmem:[#allocation2 + $0x10] sm:$0xff]
    %v63 = vld [vmem:[#allocation2 + $0x18] sm:$0xff]
    %v64 = vld [vmem:[#allocation2 + $0x20] sm:$0xff]
    %v65 = vld [vmem:[#allocation2 + $0x28] sm:$0xff]
    %v66 = vld [vmem:[#allocation2 + $0x30] sm:$0xff]
    %v67 = vld [vmem:[#allocation2 + $0x38] sm:$0xff]
    %v68 = vld [vmem:[#allocation2 + $0x40] sm:$0xff]
    %v69 = vld [vmem:[#allocation2 + $0x48] sm:$0xff]
    %v70 = vld [vmem:[#allocation2 + $0x50] sm:$0xff]
    %v71 = vld [vmem:[#allocation2 + $0x58] sm:$0xff]
    %v72 = vld [vmem:[#allocation2 + $0x60] sm:$0xff]
    %v73 = vld [vmem:[#allocation2 + $0x68] sm:$0xff]
    %v74 = vld [vmem:[#allocation2 + $0x70] sm:$0xff]
    %v75 = vld [vmem:[#allocation2 + $0x78] sm:$0xff]
    %v76 = vld [vmem:[#allocation2 + $0x80] sm:$0xff]
    %v77 = vld [vmem:[#allocation2 + $0x88] sm:$0xff]
    %v78 = vld [vmem:[#allocation2 + $0x90] sm:$0xff]
    %v79 = vld [vmem:[#allocation2 + $0x98] sm:$0xff]
    %v80 = vld [vmem:[#allocation2 + $0xa0] sm:$0xff]
    %v81 = vld [vmem:[#allocation2 + $0xa8] sm:$0xff]
    %v82 = vld [vmem:[#allocation2 + $0xb0] sm:$0xff]
    %v83 = vld [vmem:[#allocation2 + $0xb8] sm:$0xff]
    %v84 = vld [vmem:[#allocation2 + $0xc0] sm:$0xff]
    %v85 = vld [vmem:[#allocation2 + $0xc8] sm:$0xff]
    %v86 = vld [vmem:[#allocation2 + $0xd0] sm:$0xff]
    %v87 = vld [vmem:[#allocation2 + $0xd8] sm:$0xff]
    %v88 = vld [vmem:[#allocation2 + $0xe0] sm:$0xff]
    %v89 = vld [vmem:[#allocation2 + $0xe8] sm:$0xff]
    %v90 = vld [vmem:[#allocation2 + $0xf0] sm:$0xff]
    %v91 = vld [vmem:[#allocation2 + $0xf8] sm:$0xff]
    %v92 = vld [vmem:[#allocation7] sm:$0xff]
    %v93 = vld [vmem:[#allocation7 + $0x8] sm:$0xff]
    %vm94 = vcmask 130048
    %v96 = vsel %vm94, %v92, 0
    %v99 = vsel %vm94, %v93, 0
    %101 = vmatprep.subr.mxu0 0.0
    %102 = vmatpush1.msra.mxu0 %v60
    %103 = vmatprep.subr.mxu0 0.0
    %104 = vmatpush1.msra.mxu0 %v61
    %105 = vmatprep.subr.mxu0 0.0
    %106 = vmatpush1.msra.mxu0 0.0
    %107 = vmatprep.subr.mxu0 0.0
    %108 = vmatpush1.msra.mxu0 0.0
    %109 = vmatprep.subr.mxu0 0.0
    %110 = vmatpush1.msra.mxu0 0.0
    %111 = vmatprep.subr.mxu0 0.0
    %112 = vmatpush1.msra.mxu0 0.0
    %113 = vmatprep.subr.mxu0 0.0
    %114 = vmatpush1.msra.mxu0 0.0
    %115 = vmatprep.subr.mxu0 0.0
    %116 = vmatpush1.msra.mxu0 0.0
    %117 = vmatprep.subr.mxu0 0.0
    %118 = vmatpush1.msra.mxu0 0.0
    %119 = vmatprep.subr.mxu0 0.0
    %120 = vmatpush1.msra.mxu0 0.0
    %121 = vmatprep.subr.mxu0 0.0
    %122 = vmatpush1.msra.mxu0 0.0
    %123 = vmatprep.subr.mxu0 0.0
    %124 = vmatpush1.msra.mxu0 0.0
    %125 = vmatprep.subr.mxu0 0.0
    %126 = vmatpush1.msra.mxu0 0.0
    %127 = vmatprep.subr.mxu0 0.0
    %128 = vmatpush1.msra.mxu0 0.0
    %129 = vmatprep.subr.mxu0 0.0
    %130 = vmatpush1.msra.mxu0 0.0
    %131 = vmatprep.subr.mxu0 0.0
    %132 = vmatpush1.msra.mxu0 0.0
    %133 = vmatprep.subr.mxu0 0.0
    %134 = vmatpush1.msra.mxu0 0.0
    %135 = vmatprep.subr.mxu0 0.0
    %136 = vmatpush1.msra.mxu0 0.0
    %137 = vmatprep.subr.mxu0 0.0
    %138 = vmatpush1.msra.mxu0 0.0
    %139 = vmatprep.subr.mxu0 0.0
    %140 = vmatpush1.msra.mxu0 0.0
    %141 = vmatprep.subr.mxu0 0.0
    %142 = vmatpush1.msra.mxu0 0.0
    %143 = vmatprep.subr.mxu0 0.0
    %144 = vmatpush1.msra.mxu0 0.0
    %145 = vmatprep.subr.mxu0 0.0
    %146 = vmatpush1.msra.mxu0 0.0
    %147 = vmatprep.subr.mxu0 0.0
    %148 = vmatpush1.msra.mxu0 0.0
    %149 = vmatprep.subr.mxu0 0.0
    %150 = vmatpush1.msra.mxu0 0.0
    %151 = vmatprep.subr.mxu0 0.0
    %152 = vmatpush1.msra.mxu0 0.0
    %153 = vmatprep.subr.mxu0 0.0
    %154 = vmatpush1.msra.mxu0 0.0
    %155 = vmatprep.subr.mxu0 0.0
    %156 = vmatpush1.msra.mxu0 0.0
    %157 = vmatprep.subr.mxu0 0.0
    %158 = vmatpush1.msra.mxu0 0.0
    %159 = vmatprep.subr.mxu0 0.0
    %160 = vmatpush1.msra.mxu0 0.0
    %161 = vmatprep.subr.mxu0 0.0
    %162 = vmatpush1.msra.mxu0 0.0
    %163 = vmatprep.subr.mxu0 0.0
    %164 = vmatpush1.msra.mxu0 0.0
    %165 = vmatprep.mubr.f32.mxu0 0.0
    %166 = vmatmul.mubr.f32.gmra.mrb[0].mxu0 %v96
    %v167 = vpop.f32.mrb[0].mxu0
    %v168 = vadd.f32 0.0, %v167
    %v169 = vpop.f32.mrb[0].mxu0
    %170 = vmatprep.mubr.f32.mxu0 0.0
    %171 = vmatmul.mubr.f32.gmra.mrb[0].mxu0 %v99
    %v172 = vpop.f32.mrb[0].mxu0
    %v173 = vadd.f32 0.0, %v172
    %v174 = vpop.f32.mrb[0].mxu0
    %175 = vdwg.mxu0
    %176 = vmatprep.subr.mxu0 0.0
    %177 = vmatpush1.msra.mxu0 %v62
    %178 = vmatprep.subr.mxu0 0.0
    %179 = vmatpush1.msra.mxu0 %v63
    %180 = vmatprep.subr.mxu0 0.0
    %181 = vmatpush1.msra.mxu0 0.0
    %182 = vmatprep.subr.mxu0 0.0
    %183 = vmatpush1.msra.mxu0 0.0
    %184 = vmatprep.subr.mxu0 0.0
    %185 = vmatpush1.msra.mxu0 0.0
    %186 = vmatprep.subr.mxu0 0.0
    %187 = vmatpush1.msra.mxu0 0.0
    %188 = vmatprep.subr.mxu0 0.0
    %189 = vmatpush1.msra.mxu0 0.0
    %190 = vmatprep.subr.mxu0 0.0
    %191 = vmatpush1.msra.mxu0 0.0
    %192 = vmatprep.subr.mxu0 0.0
    %193 = vmatpush1.msra.mxu0 0.0
    %194 = vmatprep.subr.mxu0 0.0
    %195 = vmatpush1.msra.mxu0 0.0
    %196 = vmatprep.subr.mxu0 0.0
    %197 = vmatpush1.msra.mxu0 0.0
    %198 = vmatprep.subr.mxu0 0.0
    %199 = vmatpush1.msra.mxu0 0.0
    %200 = vmatprep.subr.mxu0 0.0
    %201 = vmatpush1.msra.mxu0 0.0
    %202 = vmatprep.subr.mxu0 0.0
    %203 = vmatpush1.msra.mxu0 0.0
    %204 = vmatprep.subr.mxu0 0.0
    %205 = vmatpush1.msra.mxu0 0.0
    %206 = vmatprep.subr.mxu0 0.0
    %207 = vmatpush1.msra.mxu0 0.0
    %208 = vmatprep.subr.mxu0 0.0
    %209 = vmatpush1.msra.mxu0 0.0
    %210 = vmatprep.subr.mxu0 0.0
    %211 = vmatpush1.msra.mxu0 0.0
    %212 = vmatprep.subr.mxu0 0.0
    %213 = vmatpush1.msra.mxu0 0.0
    %214 = vmatprep.subr.mxu0 0.0
    %215 = vmatpush1.msra.mxu0 0.0
    %216 = vmatprep.subr.mxu0 0.0
    %217 = vmatpush1.msra.mxu0 0.0
    %218 = vmatprep.subr.mxu0 0.0
    %219 = vmatpush1.msra.mxu0 0.0
    %220 = vmatprep.subr.mxu0 0.0
    %221 = vmatpush1.msra.mxu0 0.0
    %222 = vmatprep.subr.mxu0 0.0
    %223 = vmatpush1.msra.mxu0 0.0
    %224 = vmatprep.subr.mxu0 0.0
    %225 = vmatpush1.msra.mxu0 0.0
    %226 = vmatprep.subr.mxu0 0.0
    %227 = vmatpush1.msra.mxu0 0.0
    %228 = vmatprep.subr.mxu0 0.0
    %229 = vmatpush1.msra.mxu0 0.0
    %230 = vmatprep.subr.mxu0 0.0
    %231 = vmatpush1.msra.mxu0 0.0
    %232 = vmatprep.subr.mxu0 0.0
    %233 = vmatpush1.msra.mxu0 0.0
    %234 = vmatprep.subr.mxu0 0.0
    %235 = vmatpush1.msra.mxu0 0.0
    %236 = vmatprep.subr.mxu0 0.0
    %237 = vmatpush1.msra.mxu0 0.0
    %238 = vmatprep.subr.mxu0 0.0
    %239 = vmatpush1.msra.mxu0 0.0
    %240 = vmatprep.mubr.f32.mxu0 0.0
    %241 = vmatmul.mubr.f32.gmra.mrb[0].mxu0 %v96
    %v242 = vpop.f32.mrb[0].mxu0
    %v243 = vadd.f32 0.0, %v242
    %v244 = vpop.f32.mrb[0].mxu0
    %245 = vmatprep.mubr.f32.mxu0 0.0
    %246 = vmatmul.mubr.f32.gmra.mrb[0].mxu0 %v99
    %v247 = vpop.f32.mrb[0].mxu0
    %v248 = vadd.f32 0.0, %v247
    %v249 = vpop.f32.mrb[0].mxu0
    %250 = vdwg.mxu0
    %251 = vmatprep.subr.mxu0 0.0
    %252 = vmatpush1.msra.mxu0 %v64
    %253 = vmatprep.subr.mxu0 0.0
    %254 = vmatpush1.msra.mxu0 %v65
    %255 = vmatprep.subr.mxu0 0.0
    %256 = vmatpush1.msra.mxu0 0.0
    %257 = vmatprep.subr.mxu0 0.0
    %258 = vmatpush1.msra.mxu0 0.0
    %259 = vmatprep.subr.mxu0 0.0
    %260 = vmatpush1.msra.mxu0 0.0
    %261 = vmatprep.subr.mxu0 0.0
    %262 = vmatpush1.msra.mxu0 0.0
    %263 = vmatprep.subr.mxu0 0.0
    %264 = vmatpush1.msra.mxu0 0.0
    %265 = vmatprep.subr.mxu0 0.0
    %266 = vmatpush1.msra.mxu0 0.0
    %267 = vmatprep.subr.mxu0 0.0
    %268 = vmatpush1.msra.mxu0 0.0
    %269 = vmatprep.subr.mxu0 0.0
    %270 = vmatpush1.msra.mxu0 0.0
    %271 = vmatprep.subr.mxu0 0.0
    %272 = vmatpush1.msra.mxu0 0.0
    %273 = vmatprep.subr.mxu0 0.0
    %274 = vmatpush1.msra.mxu0 0.0
    %275 = vmatprep.subr.mxu0 0.0
    %276 = vmatpush1.msra.mxu0 0.0
    %277 = vmatprep.subr.mxu0 0.0
    %278 = vmatpush1.msra.mxu0 0.0
    %279 = vmatprep.subr.mxu0 0.0
    %280 = vmatpush1.msra.mxu0 0.0
    %281 = vmatprep.subr.mxu0 0.0
    %282 = vmatpush1.msra.mxu0 0.0
    %283 = vmatprep.subr.mxu0 0.0
    %284 = vmatpush1.msra.mxu0 0.0
    %285 = vmatprep.subr.mxu0 0.0
    %286 = vmatpush1.msra.mxu0 0.0
    %287 = vmatprep.subr.mxu0 0.0
    %288 = vmatpush1.msra.mxu0 0.0
    %289 = vmatprep.subr.mxu0 0.0
    %290 = vmatpush1.msra.mxu0 0.0
    %291 = vmatprep.subr.mxu0 0.0
    %292 = vmatpush1.msra.mxu0 0.0
    %293 = vmatprep.subr.mxu0 0.0
    %294 = vmatpush1.msra.mxu0 0.0
    %295 = vmatprep.subr.mxu0 0.0
    %296 = vmatpush1.msra.mxu0 0.0
    %297 = vmatprep.subr.mxu0 0.0
    %298 = vmatpush1.msra.mxu0 0.0
    %299 = vmatprep.subr.mxu0 0.0
    %300 = vmatpush1.msra.mxu0 0.0
    %301 = vmatprep.subr.mxu0 0.0
    %302 = vmatpush1.msra.mxu0 0.0
    %303 = vmatprep.subr.mxu0 0.0
    %304 = vmatpush1.msra.mxu0 0.0
    %305 = vmatprep.subr.mxu0 0.0
    %306 = vmatpush1.msra.mxu0 0.0
    %307 = vmatprep.subr.mxu0 0.0
    %308 = vmatpush1.msra.mxu0 0.0
    %309 = vmatprep.subr.mxu0 0.0
    %310 = vmatpush1.msra.mxu0 0.0
    %311 = vmatprep.subr.mxu0 0.0
    %312 = vmatpush1.msra.mxu0 0.0
    %313 = vmatprep.subr.mxu0 0.0
    %314 = vmatpush1.msra.mxu0 0.0
    %315 = vmatprep.mubr.f32.mxu0 0.0
    %316 = vmatmul.mubr.f32.gmra.mrb[0].mxu0 %v96
    %v317 = vpop.f32.mrb[0].mxu0
    %v318 = vadd.f32 0.0, %v317
    %v319 = vpop.f32.mrb[0].mxu0
    %320 = vmatprep.mubr.f32.mxu0 0.0
    %321 = vmatmul.mubr.f32.gmra.mrb[0].mxu0 %v99
    %v322 = vpop.f32.mrb[0].mxu0
    %v323 = vadd.f32 0.0, %v322
    %v324 = vpop.f32.mrb[0].mxu0
    %325 = vdwg.mxu0
    %326 = vmatprep.subr.mxu0 0.0
    %327 = vmatpush1.msra.mxu0 %v66
    %328 = vmatprep.subr.mxu0 0.0
    %329 = vmatpush1.msra.mxu0 %v67
    %330 = vmatprep.subr.mxu0 0.0
    %331 = vmatpush1.msra.mxu0 0.0
    %332 = vmatprep.subr.mxu0 0.0
    %333 = vmatpush1.msra.mxu0 0.0
    %334 = vmatprep.subr.mxu0 0.0
    %335 = vmatpush1.msra.mxu0 0.0
    %336 = vmatprep.subr.mxu0 0.0
    %337 = vmatpush1.msra.mxu0 0.0
    %338 = vmatprep.subr.mxu0 0.0
    %339 = vmatpush1.msra.mxu0 0.0
    %340 = vmatprep.subr.mxu0 0.0
    %341 = vmatpush1.msra.mxu0 0.0
    %342 = vmatprep.subr.mxu0 0.0
    %343 = vmatpush1.msra.mxu0 0.0
    %344 = vmatprep.subr.mxu0 0.0
    %345 = vmatpush1.msra.mxu0 0.0
    %346 = vmatprep.subr.mxu0 0.0
    %347 = vmatpush1.msra.mxu0 0.0
    %348 = vmatprep.subr.mxu0 0.0
    %349 = vmatpush1.msra.mxu0 0.0
    %350 = vmatprep.subr.mxu0 0.0
    %351 = vmatpush1.msra.mxu0 0.0
    %352 = vmatprep.subr.mxu0 0.0
    %353 = vmatpush1.msra.mxu0 0.0
    %354 = vmatprep.subr.mxu0 0.0
    %355 = vmatpush1.msra.mxu0 0.0
    %356 = vmatprep.subr.mxu0 0.0
    %357 = vmatpush1.msra.mxu0 0.0
    %358 = vmatprep.subr.mxu0 0.0
    %359 = vmatpush1.msra.mxu0 0.0
    %360 = vmatprep.subr.mxu0 0.0
    %361 = vmatpush1.msra.mxu0 0.0
    %362 = vmatprep.subr.mxu0 0.0
    %363 = vmatpush1.msra.mxu0 0.0
    %364 = vmatprep.subr.mxu0 0.0
    %365 = vmatpush1.msra.mxu0 0.0
    %366 = vmatprep.subr.mxu0 0.0
    %367 = vmatpush1.msra.mxu0 0.0
    %368 = vmatprep.subr.mxu0 0.0
    %369 = vmatpush1.msra.mxu0 0.0
    %370 = vmatprep.subr.mxu0 0.0
    %371 = vmatpush1.msra.mxu0 0.0
    %372 = vmatprep.subr.mxu0 0.0
    %373 = vmatpush1.msra.mxu0 0.0
    %374 = vmatprep.subr.mxu0 0.0
    %375 = vmatpush1.msra.mxu0 0.0
    %376 = vmatprep.subr.mxu0 0.0
    %377 = vmatpush1.msra.mxu0 0.0
    %378 = vmatprep.subr.mxu0 0.0
    %379 = vmatpush1.msra.mxu0 0.0
    %380 = vmatprep.subr.mxu0 0.0
    %381 = vmatpush1.msra.mxu0 0.0
    %382 = vmatprep.subr.mxu0 0.0
    %383 = vmatpush1.msra.mxu0 0.0
    %384 = vmatprep.subr.mxu0 0.0
    %385 = vmatpush1.msra.mxu0 0.0
    %386 = vmatprep.subr.mxu0 0.0
    %387 = vmatpush1.msra.mxu0 0.0
    %388 = vmatprep.subr.mxu0 0.0
    %389 = vmatpush1.msra.mxu0 0.0
    %390 = vmatprep.mubr.f32.mxu0 0.0
    %391 = vmatmul.mubr.f32.gmra.mrb[0].mxu0 %v96
    %v392 = vpop.f32.mrb[0].mxu0
    %v393 = vadd.f32 0.0, %v392
    %v394 = vpop.f32.mrb[0].mxu0
    %395 = vmatprep.mubr.f32.mxu0 0.0
    %396 = vmatmul.mubr.f32.gmra.mrb[0].mxu0 %v99
    %v397 = vpop.f32.mrb[0].mxu0
    %v398 = vadd.f32 0.0, %v397
    %v399 = vpop.f32.mrb[0].mxu0
    %400 = vdwg.mxu0
    %401 = vmatprep.subr.mxu0 0.0
    %402 = vmatpush1.msra.mxu0 %v68
    %403 = vmatprep.subr.mxu0 0.0
    %404 = vmatpush1.msra.mxu0 %v69
    %405 = vmatprep.subr.mxu0 0.0
    %406 = vmatpush1.msra.mxu0 0.0
    %407 = vmatprep.subr.mxu0 0.0
    %408 = vmatpush1.msra.mxu0 0.0
    %409 = vmatprep.subr.mxu0 0.0
    %410 = vmatpush1.msra.mxu0 0.0
    %411 = vmatprep.subr.mxu0 0.0
    %412 = vmatpush1.msra.mxu0 0.0
    %413 = vmatprep.subr.mxu0 0.0
    %414 = vmatpush1.msra.mxu0 0.0
    %415 = vmatprep.subr.mxu0 0.0
    %416 = vmatpush1.msra.mxu0 0.0
    %417 = vmatprep.subr.mxu0 0.0
    %418 = vmatpush1.msra.mxu0 0.0
    %419 = vmatprep.subr.mxu0 0.0
    %420 = vmatpush1.msra.mxu0 0.0
    %421 = vmatprep.subr.mxu0 0.0
    %422 = vmatpush1.msra.mxu0 0.0
    %423 = vmatprep.subr.mxu0 0.0
    %424 = vmatpush1.msra.mxu0 0.0
    %425 = vmatprep.subr.mxu0 0.0
    %426 = vmatpush1.msra.mxu0 0.0
    %427 = vmatprep.subr.mxu0 0.0
    %428 = vmatpush1.msra.mxu0 0.0
    %429 = vmatprep.subr.mxu0 0.0
    %430 = vmatpush1.msra.mxu0 0.0
    %431 = vmatprep.subr.mxu0 0.0
    %432 = vmatpush1.msra.mxu0 0.0
    %433 = vmatprep.subr.mxu0 0.0
    %434 = vmatpush1.msra.mxu0 0.0
    %435 = vmatprep.subr.mxu0 0.0
    %436 = vmatpush1.msra.mxu0 0.0
    %437 = vmatprep.subr.mxu0 0.0
    %438 = vmatpush1.msra.mxu0 0.0
    %439 = vmatprep.subr.mxu0 0.0
    %440 = vmatpush1.msra.mxu0 0.0
    %441 = vmatprep.subr.mxu0 0.0
    %442 = vmatpush1.msra.mxu0 0.0
    %443 = vmatprep.subr.mxu0 0.0
    %444 = vmatpush1.msra.mxu0 0.0
    %445 = vmatprep.subr.mxu0 0.0
    %446 = vmatpush1.msra.mxu0 0.0
    %447 = vmatprep.subr.mxu0 0.0
    %448 = vmatpush1.msra.mxu0 0.0
    %449 = vmatprep.subr.mxu0 0.0
    %450 = vmatpush1.msra.mxu0 0.0
    %451 = vmatprep.subr.mxu0 0.0
    %452 = vmatpush1.msra.mxu0 0.0
    %453 = vmatprep.subr.mxu0 0.0
    %454 = vmatpush1.msra.mxu0 0.0
    %455 = vmatprep.subr.mxu0 0.0
    %456 = vmatpush1.msra.mxu0 0.0
    %457 = vmatprep.subr.mxu0 0.0
    %458 = vmatpush1.msra.mxu0 0.0
    %459 = vmatprep.subr.mxu0 0.0
    %460 = vmatpush1.msra.mxu0 0.0
    %461 = vmatprep.subr.mxu0 0.0
    %462 = vmatpush1.msra.mxu0 0.0
    %463 = vmatprep.subr.mxu0 0.0
    %464 = vmatpush1.msra.mxu0 0.0
    %465 = vmatprep.mubr.f32.mxu0 0.0
    %466 = vmatmul.mubr.f32.gmra.mrb[0].mxu0 %v96
    %v467 = vpop.f32.mrb[0].mxu0
    %v468 = vadd.f32 0.0, %v467
    %v469 = vpop.f32.mrb[0].mxu0
    %470 = vmatprep.mubr.f32.mxu0 0.0
    %471 = vmatmul.mubr.f32.gmra.mrb[0].mxu0 %v99
    %v472 = vpop.f32.mrb[0].mxu0
    %v473 = vadd.f32 0.0, %v472
    %v474 = vpop.f32.mrb[0].mxu0
    %475 = vdwg.mxu0
    %476 = vmatprep.subr.mxu0 0.0
    %477 = vmatpush1.msra.mxu0 %v70
    %478 = vmatprep.subr.mxu0 0.0
    %479 = vmatpush1.msra.mxu0 %v71
    %480 = vmatprep.subr.mxu0 0.0
    %481 = vmatpush1.msra.mxu0 0.0
    %482 = vmatprep.subr.mxu0 0.0
    %483 = vmatpush1.msra.mxu0 0.0
    %484 = vmatprep.subr.mxu0 0.0
    %485 = vmatpush1.msra.mxu0 0.0
    %486 = vmatprep.subr.mxu0 0.0
    %487 = vmatpush1.msra.mxu0 0.0
    %488 = vmatprep.subr.mxu0 0.0
    %489 = vmatpush1.msra.mxu0 0.0
    %490 = vmatprep.subr.mxu0 0.0
    %491 = vmatpush1.msra.mxu0 0.0
    %492 = vmatprep.subr.mxu0 0.0
    %493 = vmatpush1.msra.mxu0 0.0
    %494 = vmatprep.subr.mxu0 0.0
    %495 = vmatpush1.msra.mxu0 0.0
    %496 = vmatprep.subr.mxu0 0.0
    %497 = vmatpush1.msra.mxu0 0.0
    %498 = vmatprep.subr.mxu0 0.0
    %499 = vmatpush1.msra.mxu0 0.0
    %500 = vmatprep.subr.mxu0 0.0
    %501 = vmatpush1.msra.mxu0 0.0
    %502 = vmatprep.subr.mxu0 0.0
    %503 = vmatpush1.msra.mxu0 0.0
    %504 = vmatprep.subr.mxu0 0.0
    %505 = vmatpush1.msra.mxu0 0.0
    %506 = vmatprep.subr.mxu0 0.0
    %507 = vmatpush1.msra.mxu0 0.0
    %508 = vmatprep.subr.mxu0 0.0
    %509 = vmatpush1.msra.mxu0 0.0
    %510 = vmatprep.subr.mxu0 0.0
    %511 = vmatpush1.msra.mxu0 0.0
    %512 = vmatprep.subr.mxu0 0.0
    %513 = vmatpush1.msra.mxu0 0.0
    %514 = vmatprep.subr.mxu0 0.0
    %515 = vmatpush1.msra.mxu0 0.0
    %516 = vmatprep.subr.mxu0 0.0
    %517 = vmatpush1.msra.mxu0 0.0
    %518 = vmatprep.subr.mxu0 0.0
    %519 = vmatpush1.msra.mxu0 0.0
    %520 = vmatprep.subr.mxu0 0.0
    %521 = vmatpush1.msra.mxu0 0.0
    %522 = vmatprep.subr.mxu0 0.0
    %523 = vmatpush1.msra.mxu0 0.0
    %524 = vmatprep.subr.mxu0 0.0
    %525 = vmatpush1.msra.mxu0 0.0
    %526 = vmatprep.subr.mxu0 0.0
    %527 = vmatpush1.msra.mxu0 0.0
    %528 = vmatprep.subr.mxu0 0.0
    %529 = vmatpush1.msra.mxu0 0.0
    %530 = vmatprep.subr.mxu0 0.0
    %531 = vmatpush1.msra.mxu0 0.0
    %532 = vmatprep.subr.mxu0 0.0
    %533 = vmatpush1.msra.mxu0 0.0
    %534 = vmatprep.subr.mxu0 0.0
    %535 = vmatpush1.msra.mxu0 0.0
    %536 = vmatprep.subr.mxu0 0.0
    %537 = vmatpush1.msra.mxu0 0.0
    %538 = vmatprep.subr.mxu0 0.0
    %539 = vmatpush1.msra.mxu0 0.0
    %540 = vmatprep.mubr.f32.mxu0 0.0
    %541 = vmatmul.mubr.f32.gmra.mrb[0].mxu0 %v96
    %v542 = vpop.f32.mrb[0].mxu0
    %v543 = vadd.f32 0.0, %v542
    %v544 = vpop.f32.mrb[0].mxu0
    %545 = vmatprep.mubr.f32.mxu0 0.0
    %546 = vmatmul.mubr.f32.gmra.mrb[0].mxu0 %v99
    %v547 = vpop.f32.mrb[0].mxu0
    %v548 = vadd.f32 0.0, %v547
    %v549 = vpop.f32.mrb[0].mxu0
    %550 = vdwg.mxu0
    %551 = vmatprep.subr.mxu0 0.0
    %552 = vmatpush1.msra.mxu0 %v72
    %553 = vmatprep.subr.mxu0 0.0
    %554 = vmatpush1.msra.mxu0 %v73
    %555 = vmatprep.subr.mxu0 0.0
    %556 = vmatpush1.msra.mxu0 0.0
    %557 = vmatprep.subr.mxu0 0.0
    %558 = vmatpush1.msra.mxu0 0.0
    %559 = vmatprep.subr.mxu0 0.0
    %560 = vmatpush1.msra.mxu0 0.0
    %561 = vmatprep.subr.mxu0 0.0
    %562 = vmatpush1.msra.mxu0 0.0
    %563 = vmatprep.subr.mxu0 0.0
    %564 = vmatpush1.msra.mxu0 0.0
    %565 = vmatprep.subr.mxu0 0.0
    %566 = vmatpush1.msra.mxu0 0.0
    %567 = vmatprep.subr.mxu0 0.0
    %568 = vmatpush1.msra.mxu0 0.0
    %569 = vmatprep.subr.mxu0 0.0
    %570 = vmatpush1.msra.mxu0 0.0
    %571 = vmatprep.subr.mxu0 0.0
    %572 = vmatpush1.msra.mxu0 0.0
    %573 = vmatprep.subr.mxu0 0.0
    %574 = vmatpush1.msra.mxu0 0.0
    %575 = vmatprep.subr.mxu0 0.0
    %576 = vmatpush1.msra.mxu0 0.0
    %577 = vmatprep.subr.mxu0 0.0
    %578 = vmatpush1.msra.mxu0 0.0
    %579 = vmatprep.subr.mxu0 0.0
    %580 = vmatpush1.msra.mxu0 0.0
    %581 = vmatprep.subr.mxu0 0.0
    %582 = vmatpush1.msra.mxu0 0.0
    %583 = vmatprep.subr.mxu0 0.0
    %584 = vmatpush1.msra.mxu0 0.0
    %585 = vmatprep.subr.mxu0 0.0
    %586 = vmatpush1.msra.mxu0 0.0
    %587 = vmatprep.subr.mxu0 0.0
    %588 = vmatpush1.msra.mxu0 0.0
    %589 = vmatprep.subr.mxu0 0.0
    %590 = vmatpush1.msra.mxu0 0.0
    %591 = vmatprep.subr.mxu0 0.0
    %592 = vmatpush1.msra.mxu0 0.0
    %593 = vmatprep.subr.mxu0 0.0
    %594 = vmatpush1.msra.mxu0 0.0
    %595 = vmatprep.subr.mxu0 0.0
    %596 = vmatpush1.msra.mxu0 0.0
    %597 = vmatprep.subr.mxu0 0.0
    %598 = vmatpush1.msra.mxu0 0.0
    %599 = vmatprep.subr.mxu0 0.0
    %600 = vmatpush1.msra.mxu0 0.0
    %601 = vmatprep.subr.mxu0 0.0
    %602 = vmatpush1.msra.mxu0 0.0
    %603 = vmatprep.subr.mxu0 0.0
    %604 = vmatpush1.msra.mxu0 0.0
    %605 = vmatprep.subr.mxu0 0.0
    %606 = vmatpush1.msra.mxu0 0.0
    %607 = vmatprep.subr.mxu0 0.0
    %608 = vmatpush1.msra.mxu0 0.0
    %609 = vmatprep.subr.mxu0 0.0
    %610 = vmatpush1.msra.mxu0 0.0
    %611 = vmatprep.subr.mxu0 0.0
    %612 = vmatpush1.msra.mxu0 0.0
    %613 = vmatprep.subr.mxu0 0.0
    %614 = vmatpush1.msra.mxu0 0.0
    %615 = vmatprep.mubr.f32.mxu0 0.0
    %616 = vmatmul.mubr.f32.gmra.mrb[0].mxu0 %v96
    %v617 = vpop.f32.mrb[0].mxu0
    %v618 = vadd.f32 0.0, %v617
    %v619 = vpop.f32.mrb[0].mxu0
    %620 = vmatprep.mubr.f32.mxu0 0.0
    %621 = vmatmul.mubr.f32.gmra.mrb[0].mxu0 %v99
    %v622 = vpop.f32.mrb[0].mxu0
    %v623 = vadd.f32 0.0, %v622
    %v624 = vpop.f32.mrb[0].mxu0
    %625 = vdwg.mxu0
    %626 = vmatprep.subr.mxu0 0.0
    %627 = vmatpush1.msra.mxu0 %v74
    %628 = vmatprep.subr.mxu0 0.0
    %629 = vmatpush1.msra.mxu0 %v75
    %630 = vmatprep.subr.mxu0 0.0
    %631 = vmatpush1.msra.mxu0 0.0
    %632 = vmatprep.subr.mxu0 0.0
    %633 = vmatpush1.msra.mxu0 0.0
    %634 = vmatprep.subr.mxu0 0.0
    %635 = vmatpush1.msra.mxu0 0.0
    %636 = vmatprep.subr.mxu0 0.0
    %637 = vmatpush1.msra.mxu0 0.0
    %638 = vmatprep.subr.mxu0 0.0
    %639 = vmatpush1.msra.mxu0 0.0
    %640 = vmatprep.subr.mxu0 0.0
    %641 = vmatpush1.msra.mxu0 0.0
    %642 = vmatprep.subr.mxu0 0.0
    %643 = vmatpush1.msra.mxu0 0.0
    %644 = vmatprep.subr.mxu0 0.0
    %645 = vmatpush1.msra.mxu0 0.0
    %646 = vmatprep.subr.mxu0 0.0
    %647 = vmatpush1.msra.mxu0 0.0
    %648 = vmatprep.subr.mxu0 0.0
    %649 = vmatpush1.msra.mxu0 0.0
    %650 = vmatprep.subr.mxu0 0.0
    %651 = vmatpush1.msra.mxu0 0.0
    %652 = vmatprep.subr.mxu0 0.0
    %653 = vmatpush1.msra.mxu0 0.0
    %654 = vmatprep.subr.mxu0 0.0
    %655 = vmatpush1.msra.mxu0 0.0
    %656 = vmatprep.subr.mxu0 0.0
    %657 = vmatpush1.msra.mxu0 0.0
    %658 = vmatprep.subr.mxu0 0.0
    %659 = vmatpush1.msra.mxu0 0.0
    %660 = vmatprep.subr.mxu0 0.0
    %661 = vmatpush1.msra.mxu0 0.0
    %662 = vmatprep.subr.mxu0 0.0
    %663 = vmatpush1.msra.mxu0 0.0
    %664 = vmatprep.subr.mxu0 0.0
    %665 = vmatpush1.msra.mxu0 0.0
    %666 = vmatprep.subr.mxu0 0.0
    %667 = vmatpush1.msra.mxu0 0.0
    %668 = vmatprep.subr.mxu0 0.0
    %669 = vmatpush1.msra.mxu0 0.0
    %670 = vmatprep.subr.mxu0 0.0
    %671 = vmatpush1.msra.mxu0 0.0
    %672 = vmatprep.subr.mxu0 0.0
    %673 = vmatpush1.msra.mxu0 0.0
    %674 = vmatprep.subr.mxu0 0.0
    %675 = vmatpush1.msra.mxu0 0.0
    %676 = vmatprep.subr.mxu0 0.0
    %677 = vmatpush1.msra.mxu0 0.0
    %678 = vmatprep.subr.mxu0 0.0
    %679 = vmatpush1.msra.mxu0 0.0
    %680 = vmatprep.subr.mxu0 0.0
    %681 = vmatpush1.msra.mxu0 0.0
    %682 = vmatprep.subr.mxu0 0.0
    %683 = vmatpush1.msra.mxu0 0.0
    %684 = vmatprep.subr.mxu0 0.0
    %685 = vmatpush1.msra.mxu0 0.0
    %686 = vmatprep.subr.mxu0 0.0
    %687 = vmatpush1.msra.mxu0 0.0
    %688 = vmatprep.subr.mxu0 0.0
    %689 = vmatpush1.msra.mxu0 0.0
    %690 = vmatprep.mubr.f32.mxu0 0.0
    %691 = vmatmul.mubr.f32.gmra.mrb[0].mxu0 %v96
    %v692 = vpop.f32.mrb[0].mxu0
    %v693 = vadd.f32 0.0, %v692
    %v694 = vpop.f32.mrb[0].mxu0
    %695 = vmatprep.mubr.f32.mxu0 0.0
    %696 = vmatmul.mubr.f32.gmra.mrb[0].mxu0 %v99
    %v697 = vpop.f32.mrb[0].mxu0
    %v698 = vadd.f32 0.0, %v697
    %v699 = vpop.f32.mrb[0].mxu0
    %700 = vdwg.mxu0
    %701 = vmatprep.subr.mxu0 0.0
    %702 = vmatpush1.msra.mxu0 %v76
    %703 = vmatprep.subr.mxu0 0.0
    %704 = vmatpush1.msra.mxu0 %v77
    %705 = vmatprep.subr.mxu0 0.0
    %706 = vmatpush1.msra.mxu0 0.0
    %707 = vmatprep.subr.mxu0 0.0
    %708 = vmatpush1.msra.mxu0 0.0
    %709 = vmatprep.subr.mxu0 0.0
    %710 = vmatpush1.msra.mxu0 0.0
    %711 = vmatprep.subr.mxu0 0.0
    %712 = vmatpush1.msra.mxu0 0.0
    %713 = vmatprep.subr.mxu0 0.0
    %714 = vmatpush1.msra.mxu0 0.0
    %715 = vmatprep.subr.mxu0 0.0
    %716 = vmatpush1.msra.mxu0 0.0
    %717 = vmatprep.subr.mxu0 0.0
    %718 = vmatpush1.msra.mxu0 0.0
    %719 = vmatprep.subr.mxu0 0.0
    %720 = vmatpush1.msra.mxu0 0.0
    %721 = vmatprep.subr.mxu0 0.0
    %722 = vmatpush1.msra.mxu0 0.0
    %723 = vmatprep.subr.mxu0 0.0
    %724 = vmatpush1.msra.mxu0 0.0
    %725 = vmatprep.subr.mxu0 0.0
    %726 = vmatpush1.msra.mxu0 0.0
    %727 = vmatprep.subr.mxu0 0.0
    %728 = vmatpush1.msra.mxu0 0.0
    %729 = vmatprep.subr.mxu0 0.0
    %730 = vmatpush1.msra.mxu0 0.0
    %731 = vmatprep.subr.mxu0 0.0
    %732 = vmatpush1.msra.mxu0 0.0
    %733 = vmatprep.subr.mxu0 0.0
    %734 = vmatpush1.msra.mxu0 0.0
    %735 = vmatprep.subr.mxu0 0.0
    %736 = vmatpush1.msra.mxu0 0.0
    %737 = vmatprep.subr.mxu0 0.0
    %738 = vmatpush1.msra.mxu0 0.0
    %739 = vmatprep.subr.mxu0 0.0
    %740 = vmatpush1.msra.mxu0 0.0
    %741 = vmatprep.subr.mxu0 0.0
    %742 = vmatpush1.msra.mxu0 0.0
    %743 = vmatprep.subr.mxu0 0.0
    %744 = vmatpush1.msra.mxu0 0.0
    %745 = vmatprep.subr.mxu0 0.0
    %746 = vmatpush1.msra.mxu0 0.0
    %747 = vmatprep.subr.mxu0 0.0
    %748 = vmatpush1.msra.mxu0 0.0
    %749 = vmatprep.subr.mxu0 0.0
    %750 = vmatpush1.msra.mxu0 0.0
    %751 = vmatprep.subr.mxu0 0.0
    %752 = vmatpush1.msra.mxu0 0.0
    %753 = vmatprep.subr.mxu0 0.0
    %754 = vmatpush1.msra.mxu0 0.0
    %755 = vmatprep.subr.mxu0 0.0
    %756 = vmatpush1.msra.mxu0 0.0
    %757 = vmatprep.subr.mxu0 0.0
    %758 = vmatpush1.msra.mxu0 0.0
    %759 = vmatprep.subr.mxu0 0.0
    %760 = vmatpush1.msra.mxu0 0.0
    %761 = vmatprep.subr.mxu0 0.0
    %762 = vmatpush1.msra.mxu0 0.0
    %763 = vmatprep.subr.mxu0 0.0
    %764 = vmatpush1.msra.mxu0 0.0
    %765 = vmatprep.mubr.f32.mxu0 0.0
    %766 = vmatmul.mubr.f32.gmra.mrb[0].mxu0 %v96
    %v767 = vpop.f32.mrb[0].mxu0
    %v768 = vadd.f32 0.0, %v767
    %v769 = vpop.f32.mrb[0].mxu0
    %770 = vmatprep.mubr.f32.mxu0 0.0
    %771 = vmatmul.mubr.f32.gmra.mrb[0].mxu0 %v99
    %v772 = vpop.f32.mrb[0].mxu0
    %v773 = vadd.f32 0.0, %v772
    %v774 = vpop.f32.mrb[0].mxu0
    %775 = vdwg.mxu0
    %776 = vmatprep.subr.mxu0 0.0
    %777 = vmatpush1.msra.mxu0 %v78
    %778 = vmatprep.subr.mxu0 0.0
    %779 = vmatpush1.msra.mxu0 %v79
    %780 = vmatprep.subr.mxu0 0.0
    %781 = vmatpush1.msra.mxu0 0.0
    %782 = vmatprep.subr.mxu0 0.0
    %783 = vmatpush1.msra.mxu0 0.0
    %784 = vmatprep.subr.mxu0 0.0
    %785 = vmatpush1.msra.mxu0 0.0
    %786 = vmatprep.subr.mxu0 0.0
    %787 = vmatpush1.msra.mxu0 0.0
    %788 = vmatprep.subr.mxu0 0.0
    %789 = vmatpush1.msra.mxu0 0.0
    %790 = vmatprep.subr.mxu0 0.0
    %791 = vmatpush1.msra.mxu0 0.0
    %792 = vmatprep.subr.mxu0 0.0
    %793 = vmatpush1.msra.mxu0 0.0
    %794 = vmatprep.subr.mxu0 0.0
    %795 = vmatpush1.msra.mxu0 0.0
    %796 = vmatprep.subr.mxu0 0.0
    %797 = vmatpush1.msra.mxu0 0.0
    %798 = vmatprep.subr.mxu0 0.0
    %799 = vmatpush1.msra.mxu0 0.0
    %800 = vmatprep.subr.mxu0 0.0
    %801 = vmatpush1.msra.mxu0 0.0
    %802 = vmatprep.subr.mxu0 0.0
    %803 = vmatpush1.msra.mxu0 0.0
    %804 = vmatprep.subr.mxu0 0.0
    %805 = vmatpush1.msra.mxu0 0.0
    %806 = vmatprep.subr.mxu0 0.0
    %807 = vmatpush1.msra.mxu0 0.0
    %808 = vmatprep.subr.mxu0 0.0
    %809 = vmatpush1.msra.mxu0 0.0
    %810 = vmatprep.subr.mxu0 0.0
    %811 = vmatpush1.msra.mxu0 0.0
    %812 = vmatprep.subr.mxu0 0.0
    %813 = vmatpush1.msra.mxu0 0.0
    %814 = vmatprep.subr.mxu0 0.0
    %815 = vmatpush1.msra.mxu0 0.0
    %816 = vmatprep.subr.mxu0 0.0
    %817 = vmatpush1.msra.mxu0 0.0
    %818 = vmatprep.subr.mxu0 0.0
    %819 = vmatpush1.msra.mxu0 0.0
    %820 = vmatprep.subr.mxu0 0.0
    %821 = vmatpush1.msra.mxu0 0.0
    %822 = vmatprep.subr.mxu0 0.0
    %823 = vmatpush1.msra.mxu0 0.0
    %824 = vmatprep.subr.mxu0 0.0
    %825 = vmatpush1.msra.mxu0 0.0
    %826 = vmatprep.subr.mxu0 0.0
    %827 = vmatpush1.msra.mxu0 0.0
    %828 = vmatprep.subr.mxu0 0.0
    %829 = vmatpush1.msra.mxu0 0.0
    %830 = vmatprep.subr.mxu0 0.0
    %831 = vmatpush1.msra.mxu0 0.0
    %832 = vmatprep.subr.mxu0 0.0
    %833 = vmatpush1.msra.mxu0 0.0
    %834 = vmatprep.subr.mxu0 0.0
    %835 = vmatpush1.msra.mxu0 0.0
    %836 = vmatprep.subr.mxu0 0.0
    %837 = vmatpush1.msra.mxu0 0.0
    %838 = vmatprep.subr.mxu0 0.0
    %839 = vmatpush1.msra.mxu0 0.0
    %840 = vmatprep.mubr.f32.mxu0 0.0
    %841 = vmatmul.mubr.f32.gmra.mrb[0].mxu0 %v96
    %v842 = vpop.f32.mrb[0].mxu0
    %v843 = vadd.f32 0.0, %v842
    %v844 = vpop.f32.mrb[0].mxu0
    %845 = vmatprep.mubr.f32.mxu0 0.0
    %846 = vmatmul.mubr.f32.gmra.mrb[0].mxu0 %v99
    %v847 = vpop.f32.mrb[0].mxu0
    %v848 = vadd.f32 0.0, %v847
    %v849 = vpop.f32.mrb[0].mxu0
    %850 = vdwg.mxu0
    %851 = vmatprep.subr.mxu0 0.0
    %852 = vmatpush1.msra.mxu0 %v80
    %853 = vmatprep.subr.mxu0 0.0
    %854 = vmatpush1.msra.mxu0 %v81
    %855 = vmatprep.subr.mxu0 0.0
    %856 = vmatpush1.msra.mxu0 0.0
    %857 = vmatprep.subr.mxu0 0.0
    %858 = vmatpush1.msra.mxu0 0.0
    %859 = vmatprep.subr.mxu0 0.0
    %860 = vmatpush1.msra.mxu0 0.0
    %861 = vmatprep.subr.mxu0 0.0
    %862 = vmatpush1.msra.mxu0 0.0
    %863 = vmatprep.subr.mxu0 0.0
    %864 = vmatpush1.msra.mxu0 0.0
    %865 = vmatprep.subr.mxu0 0.0
    %866 = vmatpush1.msra.mxu0 0.0
    %867 = vmatprep.subr.mxu0 0.0
    %868 = vmatpush1.msra.mxu0 0.0
    %869 = vmatprep.subr.mxu0 0.0
    %870 = vmatpush1.msra.mxu0 0.0
    %871 = vmatprep.subr.mxu0 0.0
    %872 = vmatpush1.msra.mxu0 0.0
    %873 = vmatprep.subr.mxu0 0.0
    %874 = vmatpush1.msra.mxu0 0.0
    %875 = vmatprep.subr.mxu0 0.0
    %876 = vmatpush1.msra.mxu0 0.0
    %877 = vmatprep.subr.mxu0 0.0
    %878 = vmatpush1.msra.mxu0 0.0
    %879 = vmatprep.subr.mxu0 0.0
    %880 = vmatpush1.msra.mxu0 0.0
    %881 = vmatprep.subr.mxu0 0.0
    %882 = vmatpush1.msra.mxu0 0.0
    %883 = vmatprep.subr.mxu0 0.0
    %884 = vmatpush1.msra.mxu0 0.0
    %885 = vmatprep.subr.mxu0 0.0
    %886 = vmatpush1.msra.mxu0 0.0
    %887 = vmatprep.subr.mxu0 0.0
    %888 = vmatpush1.msra.mxu0 0.0
    %889 = vmatprep.subr.mxu0 0.0
    %890 = vmatpush1.msra.mxu0 0.0
    %891 = vmatprep.subr.mxu0 0.0
    %892 = vmatpush1.msra.mxu0 0.0
    %893 = vmatprep.subr.mxu0 0.0
    %894 = vmatpush1.msra.mxu0 0.0
    %895 = vmatprep.subr.mxu0 0.0
    %896 = vmatpush1.msra.mxu0 0.0
    %897 = vmatprep.subr.mxu0 0.0
    %898 = vmatpush1.msra.mxu0 0.0
    %899 = vmatprep.subr.mxu0 0.0
    %900 = vmatpush1.msra.mxu0 0.0
    %901 = vmatprep.subr.mxu0 0.0
    %902 = vmatpush1.msra.mxu0 0.0
    %903 = vmatprep.subr.mxu0 0.0
    %904 = vmatpush1.msra.mxu0 0.0
    %905 = vmatprep.subr.mxu0 0.0
    %906 = vmatpush1.msra.mxu0 0.0
    %907 = vmatprep.subr.mxu0 0.0
    %908 = vmatpush1.msra.mxu0 0.0
    %909 = vmatprep.subr.mxu0 0.0
    %910 = vmatpush1.msra.mxu0 0.0
    %911 = vmatprep.subr.mxu0 0.0
    %912 = vmatpush1.msra.mxu0 0.0
    %913 = vmatprep.subr.mxu0 0.0
    %914 = vmatpush1.msra.mxu0 0.0
    %915 = vmatprep.mubr.f32.mxu0 0.0
    %916 = vmatmul.mubr.f32.gmra.mrb[0].mxu0 %v96
    %v917 = vpop.f32.mrb[0].mxu0
    %v918 = vadd.f32 0.0, %v917
    %v919 = vpop.f32.mrb[0].mxu0
    %920 = vmatprep.mubr.f32.mxu0 0.0
    %921 = vmatmul.mubr.f32.gmra.mrb[0].mxu0 %v99
    %v922 = vpop.f32.mrb[0].mxu0
    %v923 = vadd.f32 0.0, %v922
    %v924 = vpop.f32.mrb[0].mxu0
    %925 = vdwg.mxu0
    %926 = vmatprep.subr.mxu0 0.0
    %927 = vmatpush1.msra.mxu0 %v82
    %928 = vmatprep.subr.mxu0 0.0
    %929 = vmatpush1.msra.mxu0 %v83
    %930 = vmatprep.subr.mxu0 0.0
    %931 = vmatpush1.msra.mxu0 0.0
    %932 = vmatprep.subr.mxu0 0.0
    %933 = vmatpush1.msra.mxu0 0.0
    %934 = vmatprep.subr.mxu0 0.0
    %935 = vmatpush1.msra.mxu0 0.0
    %936 = vmatprep.subr.mxu0 0.0
    %937 = vmatpush1.msra.mxu0 0.0
    %938 = vmatprep.subr.mxu0 0.0
    %939 = vmatpush1.msra.mxu0 0.0
    %940 = vmatprep.subr.mxu0 0.0
    %941 = vmatpush1.msra.mxu0 0.0
    %942 = vmatprep.subr.mxu0 0.0
    %943 = vmatpush1.msra.mxu0 0.0
    %944 = vmatprep.subr.mxu0 0.0
    %945 = vmatpush1.msra.mxu0 0.0
    %946 = vmatprep.subr.mxu0 0.0
    %947 = vmatpush1.msra.mxu0 0.0
    %948 = vmatprep.subr.mxu0 0.0
    %949 = vmatpush1.msra.mxu0 0.0
    %950 = vmatprep.subr.mxu0 0.0
    %951 = vmatpush1.msra.mxu0 0.0
    %952 = vmatprep.subr.mxu0 0.0
    %953 = vmatpush1.msra.mxu0 0.0
    %954 = vmatprep.subr.mxu0 0.0
    %955 = vmatpush1.msra.mxu0 0.0
    %956 = vmatprep.subr.mxu0 0.0
    %957 = vmatpush1.msra.mxu0 0.0
    %958 = vmatprep.subr.mxu0 0.0
    %959 = vmatpush1.msra.mxu0 0.0
    %960 = vmatprep.subr.mxu0 0.0
    %961 = vmatpush1.msra.mxu0 0.0
    %962 = vmatprep.subr.mxu0 0.0
    %963 = vmatpush1.msra.mxu0 0.0
    %964 = vmatprep.subr.mxu0 0.0
    %965 = vmatpush1.msra.mxu0 0.0
    %966 = vmatprep.subr.mxu0 0.0
    %967 = vmatpush1.msra.mxu0 0.0
    %968 = vmatprep.subr.mxu0 0.0
    %969 = vmatpush1.msra.mxu0 0.0
    %970 = vmatprep.subr.mxu0 0.0
    %971 = vmatpush1.msra.mxu0 0.0
    %972 = vmatprep.subr.mxu0 0.0
    %973 = vmatpush1.msra.mxu0 0.0
    %974 = vmatprep.subr.mxu0 0.0
    %975 = vmatpush1.msra.mxu0 0.0
    %976 = vmatprep.subr.mxu0 0.0
    %977 = vmatpush1.msra.mxu0 0.0
    %978 = vmatprep.subr.mxu0 0.0
    %979 = vmatpush1.msra.mxu0 0.0
    %980 = vmatprep.subr.mxu0 0.0
    %981 = vmatpush1.msra.mxu0 0.0
    %982 = vmatprep.subr.mxu0 0.0
    %983 = vmatpush1.msra.mxu0 0.0
    %984 = vmatprep.subr.mxu0 0.0
    %985 = vmatpush1.msra.mxu0 0.0
    %986 = vmatprep.subr.mxu0 0.0
    %987 = vmatpush1.msra.mxu0 0.0
    %988 = vmatprep.subr.mxu0 0.0
    %989 = vmatpush1.msra.mxu0 0.0
    %990 = vmatprep.mubr.f32.mxu0 0.0
    %991 = vmatmul.mubr.f32.gmra.mrb[0].mxu0 %v96
    %v992 = vpop.f32.mrb[0].mxu0
    %v993 = vadd.f32 0.0, %v992
    %v994 = vpop.f32.mrb[0].mxu0
    %995 = vmatprep.mubr.f32.mxu0 0.0
    %996 = vmatmul.mubr.f32.gmra.mrb[0].mxu0 %v99
    %v997 = vpop.f32.mrb[0].mxu0
    %v998 = vadd.f32 0.0, %v997
    %v999 = vpop.f32.mrb[0].mxu0
    %1000 = vdwg.mxu0
    %1001 = vmatprep.subr.mxu0 0.0
    %1002 = vmatpush1.msra.mxu0 %v84
    %1003 = vmatprep.subr.mxu0 0.0
    %1004 = vmatpush1.msra.mxu0 %v85
    %1005 = vmatprep.subr.mxu0 0.0
    %1006 = vmatpush1.msra.mxu0 0.0
    %1007 = vmatprep.subr.mxu0 0.0
    %1008 = vmatpush1.msra.mxu0 0.0
    %1009 = vmatprep.subr.mxu0 0.0
    %1010 = vmatpush1.msra.mxu0 0.0
    %1011 = vmatprep.subr.mxu0 0.0
    %1012 = vmatpush1.msra.mxu0 0.0
    %1013 = vmatprep.subr.mxu0 0.0
    %1014 = vmatpush1.msra.mxu0 0.0
    %1015 = vmatprep.subr.mxu0 0.0
    %1016 = vmatpush1.msra.mxu0 0.0
    %1017 = vmatprep.subr.mxu0 0.0
    %1018 = vmatpush1.msra.mxu0 0.0
    %1019 = vmatprep.subr.mxu0 0.0
    %1020 = vmatpush1.msra.mxu0 0.0
    %1021 = vmatprep.subr.mxu0 0.0
    %1022 = vmatpush1.msra.mxu0 0.0
    %1023 = vmatprep.subr.mxu0 0.0
    %1024 = vmatpush1.msra.mxu0 0.0
    %1025 = vmatprep.subr.mxu0 0.0
    %1026 = vmatpush1.msra.mxu0 0.0
    %1027 = vmatprep.subr.mxu0 0.0
    %1028 = vmatpush1.msra.mxu0 0.0
    %1029 = vmatprep.subr.mxu0 0.0
    %1030 = vmatpush1.msra.mxu0 0.0
    %1031 = vmatprep.subr.mxu0 0.0
    %1032 = vmatpush1.msra.mxu0 0.0
    %1033 = vmatprep.subr.mxu0 0.0
    %1034 = vmatpush1.msra.mxu0 0.0
    %1035 = vmatprep.subr.mxu0 0.0
    %1036 = vmatpush1.msra.mxu0 0.0
    %1037 = vmatprep.subr.mxu0 0.0
    %1038 = vmatpush1.msra.mxu0 0.0
    %1039 = vmatprep.subr.mxu0 0.0
    %1040 = vmatpush1.msra.mxu0 0.0
    %1041 = vmatprep.subr.mxu0 0.0
    %1042 = vmatpush1.msra.mxu0 0.0
    %1043 = vmatprep.subr.mxu0 0.0
    %1044 = vmatpush1.msra.mxu0 0.0
    %1045 = vmatprep.subr.mxu0 0.0
    %1046 = vmatpush1.msra.mxu0 0.0
    %1047 = vmatprep.subr.mxu0 0.0
    %1048 = vmatpush1.msra.mxu0 0.0
    %1049 = vmatprep.subr.mxu0 0.0
    %1050 = vmatpush1.msra.mxu0 0.0
    %1051 = vmatprep.subr.mxu0 0.0
    %1052 = vmatpush1.msra.mxu0 0.0
    %1053 = vmatprep.subr.mxu0 0.0
    %1054 = vmatpush1.msra.mxu0 0.0
    %1055 = vmatprep.subr.mxu0 0.0
    %1056 = vmatpush1.msra.mxu0 0.0
    %1057 = vmatprep.subr.mxu0 0.0
    %1058 = vmatpush1.msra.mxu0 0.0
    %1059 = vmatprep.subr.mxu0 0.0
    %1060 = vmatpush1.msra.mxu0 0.0
    %1061 = vmatprep.subr.mxu0 0.0
    %1062 = vmatpush1.msra.mxu0 0.0
    %1063 = vmatprep.subr.mxu0 0.0
    %1064 = vmatpush1.msra.mxu0 0.0
    %1065 = vmatprep.mubr.f32.mxu0 0.0
    %1066 = vmatmul.mubr.f32.gmra.mrb[0].mxu0 %v96
    %v1067 = vpop.f32.mrb[0].mxu0
    %v1068 = vadd.f32 0.0, %v1067
    %v1069 = vpop.f32.mrb[0].mxu0
    %1070 = vmatprep.mubr.f32.mxu0 0.0
    %1071 = vmatmul.mubr.f32.gmra.mrb[0].mxu0 %v99
    %v1072 = vpop.f32.mrb[0].mxu0
    %v1073 = vadd.f32 0.0, %v1072
    %v1074 = vpop.f32.mrb[0].mxu0
    %1075 = vdwg.mxu0
    %1076 = vmatprep.subr.mxu0 0.0
    %1077 = vmatpush1.msra.mxu0 %v86
    %1078 = vmatprep.subr.mxu0 0.0
    %1079 = vmatpush1.msra.mxu0 %v87
    %1080 = vmatprep.subr.mxu0 0.0
    %1081 = vmatpush1.msra.mxu0 0.0
    %1082 = vmatprep.subr.mxu0 0.0
    %1083 = vmatpush1.msra.mxu0 0.0
    %1084 = vmatprep.subr.mxu0 0.0
    %1085 = vmatpush1.msra.mxu0 0.0
    %1086 = vmatprep.subr.mxu0 0.0
    %1087 = vmatpush1.msra.mxu0 0.0
    %1088 = vmatprep.subr.mxu0 0.0
    %1089 = vmatpush1.msra.mxu0 0.0
    %1090 = vmatprep.subr.mxu0 0.0
    %1091 = vmatpush1.msra.mxu0 0.0
    %1092 = vmatprep.subr.mxu0 0.0
    %1093 = vmatpush1.msra.mxu0 0.0
    %1094 = vmatprep.subr.mxu0 0.0
    %1095 = vmatpush1.msra.mxu0 0.0
    %1096 = vmatprep.subr.mxu0 0.0
    %1097 = vmatpush1.msra.mxu0 0.0
    %1098 = vmatprep.subr.mxu0 0.0
    %1099 = vmatpush1.msra.mxu0 0.0
    %1100 = vmatprep.subr.mxu0 0.0
    %1101 = vmatpush1.msra.mxu0 0.0
    %1102 = vmatprep.subr.mxu0 0.0
    %1103 = vmatpush1.msra.mxu0 0.0
    %1104 = vmatprep.subr.mxu0 0.0
    %1105 = vmatpush1.msra.mxu0 0.0
    %1106 = vmatprep.subr.mxu0 0.0
    %1107 = vmatpush1.msra.mxu0 0.0
    %1108 = vmatprep.subr.mxu0 0.0
    %1109 = vmatpush1.msra.mxu0 0.0
    %1110 = vmatprep.subr.mxu0 0.0
    %1111 = vmatpush1.msra.mxu0 0.0
    %1112 = vmatprep.subr.mxu0 0.0
    %1113 = vmatpush1.msra.mxu0 0.0
    %1114 = vmatprep.subr.mxu0 0.0
    %1115 = vmatpush1.msra.mxu0 0.0
    %1116 = vmatprep.subr.mxu0 0.0
    %1117 = vmatpush1.msra.mxu0 0.0
    %1118 = vmatprep.subr.mxu0 0.0
    %1119 = vmatpush1.msra.mxu0 0.0
    %1120 = vmatprep.subr.mxu0 0.0
    %1121 = vmatpush1.msra.mxu0 0.0
    %1122 = vmatprep.subr.mxu0 0.0
    %1123 = vmatpush1.msra.mxu0 0.0
    %1124 = vmatprep.subr.mxu0 0.0
    %1125 = vmatpush1.msra.mxu0 0.0
    %1126 = vmatprep.subr.mxu0 0.0
    %1127 = vmatpush1.msra.mxu0 0.0
    %1128 = vmatprep.subr.mxu0 0.0
    %1129 = vmatpush1.msra.mxu0 0.0
    %1130 = vmatprep.subr.mxu0 0.0
    %1131 = vmatpush1.msra.mxu0 0.0
    %1132 = vmatprep.subr.mxu0 0.0
    %1133 = vmatpush1.msra.mxu0 0.0
    %1134 = vmatprep.subr.mxu0 0.0
    %1135 = vmatpush1.msra.mxu0 0.0
    %1136 = vmatprep.subr.mxu0 0.0
    %1137 = vmatpush1.msra.mxu0 0.0
    %1138 = vmatprep.subr.mxu0 0.0
    %1139 = vmatpush1.msra.mxu0 0.0
    %1140 = vmatprep.mubr.f32.mxu0 0.0
    %1141 = vmatmul.mubr.f32.gmra.mrb[0].mxu0 %v96
    %v1142 = vpop.f32.mrb[0].mxu0
    %v1143 = vadd.f32 0.0, %v1142
    %v1144 = vpop.f32.mrb[0].mxu0
    %1145 = vmatprep.mubr.f32.mxu0 0.0
    %1146 = vmatmul.mubr.f32.gmra.mrb[0].mxu0 %v99
    %v1147 = vpop.f32.mrb[0].mxu0
    %v1148 = vadd.f32 0.0, %v1147
    %v1149 = vpop.f32.mrb[0].mxu0
    %1150 = vdwg.mxu0
    %1151 = vmatprep.subr.mxu0 0.0
    %1152 = vmatpush1.msra.mxu0 %v88
    %1153 = vmatprep.subr.mxu0 0.0
    %1154 = vmatpush1.msra.mxu0 %v89
    %1155 = vmatprep.subr.mxu0 0.0
    %1156 = vmatpush1.msra.mxu0 0.0
    %1157 = vmatprep.subr.mxu0 0.0
    %1158 = vmatpush1.msra.mxu0 0.0
    %1159 = vmatprep.subr.mxu0 0.0
    %1160 = vmatpush1.msra.mxu0 0.0
    %1161 = vmatprep.subr.mxu0 0.0
    %1162 = vmatpush1.msra.mxu0 0.0
    %1163 = vmatprep.subr.mxu0 0.0
    %1164 = vmatpush1.msra.mxu0 0.0
    %1165 = vmatprep.subr.mxu0 0.0
    %1166 = vmatpush1.msra.mxu0 0.0
    %1167 = vmatprep.subr.mxu0 0.0
    %1168 = vmatpush1.msra.mxu0 0.0
    %1169 = vmatprep.subr.mxu0 0.0
    %1170 = vmatpush1.msra.mxu0 0.0
    %1171 = vmatprep.subr.mxu0 0.0
    %1172 = vmatpush1.msra.mxu0 0.0
    %1173 = vmatprep.subr.mxu0 0.0
    %1174 = vmatpush1.msra.mxu0 0.0
    %1175 = vmatprep.subr.mxu0 0.0
    %1176 = vmatpush1.msra.mxu0 0.0
    %1177 = vmatprep.subr.mxu0 0.0
    %1178 = vmatpush1.msra.mxu0 0.0
    %1179 = vmatprep.subr.mxu0 0.0
    %1180 = vmatpush1.msra.mxu0 0.0
    %1181 = vmatprep.subr.mxu0 0.0
    %1182 = vmatpush1.msra.mxu0 0.0
    %1183 = vmatprep.subr.mxu0 0.0
    %1184 = vmatpush1.msra.mxu0 0.0
    %1185 = vmatprep.subr.mxu0 0.0
    %1186 = vmatpush1.msra.mxu0 0.0
    %1187 = vmatprep.subr.mxu0 0.0
    %1188 = vmatpush1.msra.mxu0 0.0
    %1189 = vmatprep.subr.mxu0 0.0
    %1190 = vmatpush1.msra.mxu0 0.0
    %1191 = vmatprep.subr.mxu0 0.0
    %1192 = vmatpush1.msra.mxu0 0.0
    %1193 = vmatprep.subr.mxu0 0.0
    %1194 = vmatpush1.msra.mxu0 0.0
    %1195 = vmatprep.subr.mxu0 0.0
    %1196 = vmatpush1.msra.mxu0 0.0
    %1197 = vmatprep.subr.mxu0 0.0
    %1198 = vmatpush1.msra.mxu0 0.0
    %1199 = vmatprep.subr.mxu0 0.0
    %1200 = vmatpush1.msra.mxu0 0.0
    %1201 = vmatprep.subr.mxu0 0.0
    %1202 = vmatpush1.msra.mxu0 0.0
    %1203 = vmatprep.subr.mxu0 0.0
    %1204 = vmatpush1.msra.mxu0 0.0
    %1205 = vmatprep.subr.mxu0 0.0
    %1206 = vmatpush1.msra.mxu0 0.0
    %1207 = vmatprep.subr.mxu0 0.0
    %1208 = vmatpush1.msra.mxu0 0.0
    %1209 = vmatprep.subr.mxu0 0.0
    %1210 = vmatpush1.msra.mxu0 0.0
    %1211 = vmatprep.subr.mxu0 0.0
    %1212 = vmatpush1.msra.mxu0 0.0
    %1213 = vmatprep.subr.mxu0 0.0
    %1214 = vmatpush1.msra.mxu0 0.0
    %1215 = vmatprep.mubr.f32.mxu0 0.0
    %1216 = vmatmul.mubr.f32.gmra.mrb[0].mxu0 %v96
    %v1217 = vpop.f32.mrb[0].mxu0
    %v1218 = vadd.f32 0.0, %v1217
    %v1219 = vpop.f32.mrb[0].mxu0
    %1220 = vmatprep.mubr.f32.mxu0 0.0
    %1221 = vmatmul.mubr.f32.gmra.mrb[0].mxu0 %v99
    %v1222 = vpop.f32.mrb[0].mxu0
    %v1223 = vadd.f32 0.0, %v1222
    %v1224 = vpop.f32.mrb[0].mxu0
    %1225 = vdwg.mxu0
    %1226 = vmatprep.subr.mxu0 0.0
    %1227 = vmatpush1.msra.mxu0 %v90
    %1228 = vmatprep.subr.mxu0 0.0
    %1229 = vmatpush1.msra.mxu0 %v91
    %1230 = vmatprep.subr.mxu0 0.0
    %1231 = vmatpush1.msra.mxu0 0.0
    %1232 = vmatprep.subr.mxu0 0.0
    %1233 = vmatpush1.msra.mxu0 0.0
    %1234 = vmatprep.subr.mxu0 0.0
    %1235 = vmatpush1.msra.mxu0 0.0
    %1236 = vmatprep.subr.mxu0 0.0
    %1237 = vmatpush1.msra.mxu0 0.0
    %1238 = vmatprep.subr.mxu0 0.0
    %1239 = vmatpush1.msra.mxu0 0.0
    %1240 = vmatprep.subr.mxu0 0.0
    %1241 = vmatpush1.msra.mxu0 0.0
    %1242 = vmatprep.subr.mxu0 0.0
    %1243 = vmatpush1.msra.mxu0 0.0
    %1244 = vmatprep.subr.mxu0 0.0
    %1245 = vmatpush1.msra.mxu0 0.0
    %1246 = vmatprep.subr.mxu0 0.0
    %1247 = vmatpush1.msra.mxu0 0.0
    %1248 = vmatprep.subr.mxu0 0.0
    %1249 = vmatpush1.msra.mxu0 0.0
    %1250 = vmatprep.subr.mxu0 0.0
    %1251 = vmatpush1.msra.mxu0 0.0
    %1252 = vmatprep.subr.mxu0 0.0
    %1253 = vmatpush1.msra.mxu0 0.0
    %1254 = vmatprep.subr.mxu0 0.0
    %1255 = vmatpush1.msra.mxu0 0.0
    %1256 = vmatprep.subr.mxu0 0.0
    %1257 = vmatpush1.msra.mxu0 0.0
    %1258 = vmatprep.subr.mxu0 0.0
    %1259 = vmatpush1.msra.mxu0 0.0
    %1260 = vmatprep.subr.mxu0 0.0
    %1261 = vmatpush1.msra.mxu0 0.0
    %1262 = vmatprep.subr.mxu0 0.0
    %1263 = vmatpush1.msra.mxu0 0.0
    %1264 = vmatprep.subr.mxu0 0.0
    %1265 = vmatpush1.msra.mxu0 0.0
    %1266 = vmatprep.subr.mxu0 0.0
    %1267 = vmatpush1.msra.mxu0 0.0
    %1268 = vmatprep.subr.mxu0 0.0
    %1269 = vmatpush1.msra.mxu0 0.0
    %1270 = vmatprep.subr.mxu0 0.0
    %1271 = vmatpush1.msra.mxu0 0.0
    %1272 = vmatprep.subr.mxu0 0.0
    %1273 = vmatpush1.msra.mxu0 0.0
    %1274 = vmatprep.subr.mxu0 0.0
    %1275 = vmatpush1.msra.mxu0 0.0
    %1276 = vmatprep.subr.mxu0 0.0
    %1277 = vmatpush1.msra.mxu0 0.0
    %1278 = vmatprep.subr.mxu0 0.0
    %1279 = vmatpush1.msra.mxu0 0.0
    %1280 = vmatprep.subr.mxu0 0.0
    %1281 = vmatpush1.msra.mxu0 0.0
    %1282 = vmatprep.subr.mxu0 0.0
    %1283 = vmatpush1.msra.mxu0 0.0
    %1284 = vmatprep.subr.mxu0 0.0
    %1285 = vmatpush1.msra.mxu0 0.0
    %1286 = vmatprep.subr.mxu0 0.0
    %1287 = vmatpush1.msra.mxu0 0.0
    %1288 = vmatprep.subr.mxu0 0.0
    %1289 = vmatpush1.msra.mxu0 0.0
    %1290 = vmatprep.mubr.f32.mxu0 0.0
    %1291 = vmatmul.mubr.f32.gmra.mrb[0].mxu0 %v96
    %v1292 = vpop.f32.mrb[0].mxu0
    %v1293 = vadd.f32 0.0, %v1292
    %v1294 = vpop.f32.mrb[0].mxu0
    %1295 = vmatprep.mubr.f32.mxu0 0.0
    %1296 = vmatmul.mubr.f32.gmra.mrb[0].mxu0 %v99
    %v1297 = vpop.f32.mrb[0].mxu0
    %v1298 = vadd.f32 0.0, %v1297
    %v1299 = vpop.f32.mrb[0].mxu0
    %1300 = vdwg.mxu0
    %vm1301 = vcmask 261120
    %v1303 = vsel %vm1301, %v168, 0
    %v1306 = vsel %vm1301, %v173, 0
    %v1309 = vsel %vm1301, %v243, 0
    %v1312 = vsel %vm1301, %v248, 0
    %v1315 = vsel %vm1301, %v318, 0
    %v1318 = vsel %vm1301, %v323, 0
    %v1321 = vsel %vm1301, %v393, 0
    %v1324 = vsel %vm1301, %v398, 0
    %v1327 = vsel %vm1301, %v468, 0
    %v1330 = vsel %vm1301, %v473, 0
    %v1333 = vsel %vm1301, %v543, 0
    %v1336 = vsel %vm1301, %v548, 0
    %v1339 = vsel %vm1301, %v618, 0
    %v1342 = vsel %vm1301, %v623, 0
    %v1345 = vsel %vm1301, %v693, 0
    %v1348 = vsel %vm1301, %v698, 0
    %v1351 = vsel %vm1301, %v768, 0
    %v1354 = vsel %vm1301, %v773, 0
    %v1357 = vsel %vm1301, %v843, 0
    %v1360 = vsel %vm1301, %v848, 0
    %v1363 = vsel %vm1301, %v918, 0
    %v1366 = vsel %vm1301, %v923, 0
    %v1369 = vsel %vm1301, %v993, 0
    %v1372 = vsel %vm1301, %v998, 0
    %v1375 = vsel %vm1301, %v1068, 0
    %v1378 = vsel %vm1301, %v1073, 0
    %v1381 = vsel %vm1301, %v1143, 0
    %v1384 = vsel %vm1301, %v1148, 0
    %v1387 = vsel %vm1301, %v1218, 0
    %v1390 = vsel %vm1301, %v1223, 0
    %v1393 = vsel %vm1301, %v1293, 0
    %v1396 = vsel %vm1301, %v1298, 0
    %1398 = vmatprep.subr.mxu0 0.0
    %1399 = vmatpush1.msra.mxu0 %v56
    %1400 = vmatprep.subr.mxu0 0.0
    %1401 = vmatpush1.msra.mxu0 %v57
    %1402 = vmatprep.subr.mxu0 0.0
    %1403 = vmatpush1.msra.mxu0 %v58
    %1404 = vmatprep.subr.mxu0 0.0
    %1405 = vmatpush1.msra.mxu0 %v59
    %1406 = vmatprep.subr.mxu0 0.0
    %1407 = vmatpush1.msra.mxu0 0.0
    %1408 = vmatprep.subr.mxu0 0.0
    %1409 = vmatpush1.msra.mxu0 0.0
    %1410 = vmatprep.subr.mxu0 0.0
    %1411 = vmatpush1.msra.mxu0 0.0
    %1412 = vmatprep.subr.mxu0 0.0
    %1413 = vmatpush1.msra.mxu0 0.0
    %1414 = vmatprep.subr.mxu0 0.0
    %1415 = vmatpush1.msra.mxu0 0.0
    %1416 = vmatprep.subr.mxu0 0.0
    %1417 = vmatpush1.msra.mxu0 0.0
    %1418 = vmatprep.subr.mxu0 0.0
    %1419 = vmatpush1.msra.mxu0 0.0
    %1420 = vmatprep.subr.mxu0 0.0
    %1421 = vmatpush1.msra.mxu0 0.0
    %1422 = vmatprep.subr.mxu0 0.0
    %1423 = vmatpush1.msra.mxu0 0.0
    %1424 = vmatprep.subr.mxu0 0.0
    %1425 = vmatpush1.msra.mxu0 0.0
    %1426 = vmatprep.subr.mxu0 0.0
    %1427 = vmatpush1.msra.mxu0 0.0
    %1428 = vmatprep.subr.mxu0 0.0
    %1429 = vmatpush1.msra.mxu0 0.0
    %1430 = vmatprep.subr.mxu0 0.0
    %1431 = vmatpush1.msra.mxu0 0.0
    %1432 = vmatprep.subr.mxu0 0.0
    %1433 = vmatpush1.msra.mxu0 0.0
    %1434 = vmatprep.subr.mxu0 0.0
    %1435 = vmatpush1.msra.mxu0 0.0
    %1436 = vmatprep.subr.mxu0 0.0
    %1437 = vmatpush1.msra.mxu0 0.0
    %1438 = vmatprep.subr.mxu0 0.0
    %1439 = vmatpush1.msra.mxu0 0.0
    %1440 = vmatprep.subr.mxu0 0.0
    %1441 = vmatpush1.msra.mxu0 0.0
    %1442 = vmatprep.subr.mxu0 0.0
    %1443 = vmatpush1.msra.mxu0 0.0
    %1444 = vmatprep.subr.mxu0 0.0
    %1445 = vmatpush1.msra.mxu0 0.0
    %1446 = vmatprep.subr.mxu0 0.0
    %1447 = vmatpush1.msra.mxu0 0.0
    %1448 = vmatprep.subr.mxu0 0.0
    %1449 = vmatpush1.msra.mxu0 0.0
    %1450 = vmatprep.subr.mxu0 0.0
    %1451 = vmatpush1.msra.mxu0 0.0
    %1452 = vmatprep.subr.mxu0 0.0
    %1453 = vmatpush1.msra.mxu0 0.0
    %1454 = vmatprep.subr.mxu0 0.0
    %1455 = vmatpush1.msra.mxu0 0.0
    %1456 = vmatprep.subr.mxu0 0.0
    %1457 = vmatpush1.msra.mxu0 0.0
    %1458 = vmatprep.subr.mxu0 0.0
    %1459 = vmatpush1.msra.mxu0 0.0
    %1460 = vmatprep.subr.mxu0 0.0
    %1461 = vmatpush1.msra.mxu0 0.0
    %1462 = vmatprep.mubr.f32.mxu0 0.0
    %1463 = vmatmul.mubr.f32.gmra.mrb[0].mxu0 %v1303
    %v1464 = vpop.f32.mrb[0].mxu0
    %v1465 = vadd.f32 0.0, %v1464
    %v1466 = vpop.f32.mrb[0].mxu0
    %1467 = vmatprep.mubr.f32.mxu0 0.0
    %1468 = vmatmul.mubr.f32.gmra.mrb[0].mxu0 %v1306
    %v1469 = vpop.f32.mrb[0].mxu0
    %v1470 = vadd.f32 0.0, %v1469
    %v1471 = vpop.f32.mrb[0].mxu0
    %1472 = vmatprep.mubr.f32.mxu0 0.0
    %1473 = vmatmul.mubr.f32.gmra.mrb[0].mxu0 %v1309
    %v1474 = vpop.f32.mrb[0].mxu0
    %v1475 = vadd.f32 0.0, %v1474
    %v1476 = vpop.f32.mrb[0].mxu0
    %1477 = vmatprep.mubr.f32.mxu0 0.0
    %1478 = vmatmul.mubr.f32.gmra.mrb[0].mxu0 %v1312
    %v1479 = vpop.f32.mrb[0].mxu0
    %v1480 = vadd.f32 0.0, %v1479
    %v1481 = vpop.f32.mrb[0].mxu0
    %1482 = vmatprep.mubr.f32.mxu0 0.0
    %1483 = vmatmul.mubr.f32.gmra.mrb[0].mxu0 %v1315
    %v1484 = vpop.f32.mrb[0].mxu0
    %v1485 = vadd.f32 0.0, %v1484
    %v1486 = vpop.f32.mrb[0].mxu0
    %1487 = vmatprep.mubr.f32.mxu0 0.0
    %1488 = vmatmul.mubr.f32.gmra.mrb[0].mxu0 %v1318
    %v1489 = vpop.f32.mrb[0].mxu0
    %v1490 = vadd.f32 0.0, %v1489
    %v1491 = vpop.f32.mrb[0].mxu0
    %1492 = vmatprep.mubr.f32.mxu0 0.0
    %1493 = vmatmul.mubr.f32.gmra.mrb[0].mxu0 %v1321
    %v1494 = vpop.f32.mrb[0].mxu0
    %v1495 = vadd.f32 0.0, %v1494
    %v1496 = vpop.f32.mrb[0].mxu0
    %1497 = vmatprep.mubr.f32.mxu0 0.0
    %1498 = vmatmul.mubr.f32.gmra.mrb[0].mxu0 %v1324
    %v1499 = vpop.f32.mrb[0].mxu0
    %v1500 = vadd.f32 0.0, %v1499
    %v1501 = vpop.f32.mrb[0].mxu0
    %1502 = vmatprep.mubr.f32.mxu0 0.0
    %1503 = vmatmul.mubr.f32.gmra.mrb[0].mxu0 %v1327
    %v1504 = vpop.f32.mrb[0].mxu0
    %v1505 = vadd.f32 0.0, %v1504
    %v1506 = vpop.f32.mrb[0].mxu0
    %1507 = vmatprep.mubr.f32.mxu0 0.0
    %1508 = vmatmul.mubr.f32.gmra.mrb[0].mxu0 %v1330
    %v1509 = vpop.f32.mrb[0].mxu0
    %v1510 = vadd.f32 0.0, %v1509
    %v1511 = vpop.f32.mrb[0].mxu0
    %1512 = vmatprep.mubr.f32.mxu0 0.0
    %1513 = vmatmul.mubr.f32.gmra.mrb[0].mxu0 %v1333
    %v1514 = vpop.f32.mrb[0].mxu0
    %v1515 = vadd.f32 0.0, %v1514
    %v1516 = vpop.f32.mrb[0].mxu0
    %1517 = vmatprep.mubr.f32.mxu0 0.0
    %1518 = vmatmul.mubr.f32.gmra.mrb[0].mxu0 %v1336
    %v1519 = vpop.f32.mrb[0].mxu0
    %v1520 = vadd.f32 0.0, %v1519
    %v1521 = vpop.f32.mrb[0].mxu0
    %1522 = vmatprep.mubr.f32.mxu0 0.0
    %1523 = vmatmul.mubr.f32.gmra.mrb[0].mxu0 %v1339
    %v1524 = vpop.f32.mrb[0].mxu0
    %v1525 = vadd.f32 0.0, %v1524
    %v1526 = vpop.f32.mrb[0].mxu0
    %1527 = vmatprep.mubr.f32.mxu0 0.0
    %1528 = vmatmul.mubr.f32.gmra.mrb[0].mxu0 %v1342
    %v1529 = vpop.f32.mrb[0].mxu0
    %v1530 = vadd.f32 0.0, %v1529
    %v1531 = vpop.f32.mrb[0].mxu0
    %1532 = vmatprep.mubr.f32.mxu0 0.0
    %1533 = vmatmul.mubr.f32.gmra.mrb[0].mxu0 %v1345
    %v1534 = vpop.f32.mrb[0].mxu0
    %v1535 = vadd.f32 0.0, %v1534
    %v1536 = vpop.f32.mrb[0].mxu0
    %1537 = vmatprep.mubr.f32.mxu0 0.0
    %1538 = vmatmul.mubr.f32.gmra.mrb[0].mxu0 %v1348
    %v1539 = vpop.f32.mrb[0].mxu0
    %v1540 = vadd.f32 0.0, %v1539
    %v1541 = vpop.f32.mrb[0].mxu0
    %1542 = vmatprep.mubr.f32.mxu0 0.0
    %1543 = vmatmul.mubr.f32.gmra.mrb[0].mxu0 %v1351
    %v1544 = vpop.f32.mrb[0].mxu0
    %v1545 = vadd.f32 0.0, %v1544
    %v1546 = vpop.f32.mrb[0].mxu0
    %1547 = vmatprep.mubr.f32.mxu0 0.0
    %1548 = vmatmul.mubr.f32.gmra.mrb[0].mxu0 %v1354
    %v1549 = vpop.f32.mrb[0].mxu0
    %v1550 = vadd.f32 0.0, %v1549
    %v1551 = vpop.f32.mrb[0].mxu0
    %1552 = vmatprep.mubr.f32.mxu0 0.0
    %1553 = vmatmul.mubr.f32.gmra.mrb[0].mxu0 %v1357
    %v1554 = vpop.f32.mrb[0].mxu0
    %v1555 = vadd.f32 0.0, %v1554
    %v1556 = vpop.f32.mrb[0].mxu0
    %1557 = vmatprep.mubr.f32.mxu0 0.0
    %1558 = vmatmul.mubr.f32.gmra.mrb[0].mxu0 %v1360
    %v1559 = vpop.f32.mrb[0].mxu0
    %v1560 = vadd.f32 0.0, %v1559
    %v1561 = vpop.f32.mrb[0].mxu0
    %1562 = vmatprep.mubr.f32.mxu0 0.0
    %1563 = vmatmul.mubr.f32.gmra.mrb[0].mxu0 %v1363
    %v1564 = vpop.f32.mrb[0].mxu0
    %v1565 = vadd.f32 0.0, %v1564
    %v1566 = vpop.f32.mrb[0].mxu0
    %1567 = vmatprep.mubr.f32.mxu0 0.0
    %1568 = vmatmul.mubr.f32.gmra.mrb[0].mxu0 %v1366
    %v1569 = vpop.f32.mrb[0].mxu0
    %v1570 = vadd.f32 0.0, %v1569
    %v1571 = vpop.f32.mrb[0].mxu0
    %1572 = vmatprep.mubr.f32.mxu0 0.0
    %1573 = vmatmul.mubr.f32.gmra.mrb[0].mxu0 %v1369
    %v1574 = vpop.f32.mrb[0].mxu0
    %v1575 = vadd.f32 0.0, %v1574
    %v1576 = vpop.f32.mrb[0].mxu0
    %1577 = vmatprep.mubr.f32.mxu0 0.0
    %1578 = vmatmul.mubr.f32.gmra.mrb[0].mxu0 %v1372
    %v1579 = vpop.f32.mrb[0].mxu0
    %v1580 = vadd.f32 0.0, %v1579
    %v1581 = vpop.f32.mrb[0].mxu0
    %1582 = vmatprep.mubr.f32.mxu0 0.0
    %1583 = vmatmul.mubr.f32.gmra.mrb[0].mxu0 %v1375
    %v1584 = vpop.f32.mrb[0].mxu0
    %v1585 = vadd.f32 0.0, %v1584
    %v1586 = vpop.f32.mrb[0].mxu0
    %1587 = vmatprep.mubr.f32.mxu0 0.0
    %1588 = vmatmul.mubr.f32.gmra.mrb[0].mxu0 %v1378
    %v1589 = vpop.f32.mrb[0].mxu0
    %v1590 = vadd.f32 0.0, %v1589
    %v1591 = vpop.f32.mrb[0].mxu0
    %1592 = vmatprep.mubr.f32.mxu0 0.0
    %1593 = vmatmul.mubr.f32.gmra.mrb[0].mxu0 %v1381
    %v1594 = vpop.f32.mrb[0].mxu0
    %v1595 = vadd.f32 0.0, %v1594
    %v1596 = vpop.f32.mrb[0].mxu0
    %1597 = vmatprep.mubr.f32.mxu0 0.0
    %1598 = vmatmul.mubr.f32.gmra.mrb[0].mxu0 %v1384
    %v1599 = vpop.f32.mrb[0].mxu0
    %v1600 = vadd.f32 0.0, %v1599
    %v1601 = vpop.f32.mrb[0].mxu0
    %1602 = vmatprep.mubr.f32.mxu0 0.0
    %1603 = vmatmul.mubr.f32.gmra.mrb[0].mxu0 %v1387
    %v1604 = vpop.f32.mrb[0].mxu0
    %v1605 = vadd.f32 0.0, %v1604
    %v1606 = vpop.f32.mrb[0].mxu0
    %1607 = vmatprep.mubr.f32.mxu0 0.0
    %1608 = vmatmul.mubr.f32.gmra.mrb[0].mxu0 %v1390
    %v1609 = vpop.f32.mrb[0].mxu0
    %v1610 = vadd.f32 0.0, %v1609
    %v1611 = vpop.f32.mrb[0].mxu0
    %1612 = vmatprep.mubr.f32.mxu0 0.0
    %1613 = vmatmul.mubr.f32.gmra.mrb[0].mxu0 %v1393
    %v1614 = vpop.f32.mrb[0].mxu0
    %v1615 = vadd.f32 0.0, %v1614
    %v1616 = vpop.f32.mrb[0].mxu0
    %1617 = vmatprep.mubr.f32.mxu0 0.0
    %1618 = vmatmul.mubr.f32.gmra.mrb[0].mxu0 %v1396
    %v1619 = vpop.f32.mrb[0].mxu0
    %v1620 = vadd.f32 0.0, %v1619
    %v1621 = vpop.f32.mrb[0].mxu0
    %1622 = vdwg.mxu0
    %vm1623 = vcmask 523264
    %1624 = vst.msk [vmem:[#allocation8] sm:$0xff] %vm1623, %v1465
    %1625 = vst.msk [vmem:[#allocation8 + $0x8] sm:$0xff] %vm1623, %v1470
    %1626 = vst.msk [vmem:[#allocation8 + $0x10] sm:$0xff] %vm1623, %v1475
    %1627 = vst.msk [vmem:[#allocation8 + $0x18] sm:$0xff] %vm1623, %v1480
    %1628 = vst.msk [vmem:[#allocation8 + $0x20] sm:$0xff] %vm1623, %v1485
    %1629 = vst.msk [vmem:[#allocation8 + $0x28] sm:$0xff] %vm1623, %v1490
    %1630 = vst.msk [vmem:[#allocation8 + $0x30] sm:$0xff] %vm1623, %v1495
    %1631 = vst.msk [vmem:[#allocation8 + $0x38] sm:$0xff] %vm1623, %v1500
    %1632 = vst.msk [vmem:[#allocation8 + $0x40] sm:$0xff] %vm1623, %v1505
    %1633 = vst.msk [vmem:[#allocation8 + $0x48] sm:$0xff] %vm1623, %v1510
    %1634 = vst.msk [vmem:[#allocation8 + $0x50] sm:$0xff] %vm1623, %v1515
    %1635 = vst.msk [vmem:[#allocation8 + $0x58] sm:$0xff] %vm1623, %v1520
    %1636 = vst.msk [vmem:[#allocation8 + $0x60] sm:$0xff] %vm1623, %v1525
    %1637 = vst.msk [vmem:[#allocation8 + $0x68] sm:$0xff] %vm1623, %v1530
    %1638 = vst.msk [vmem:[#allocation8 + $0x70] sm:$0xff] %vm1623, %v1535
    %1639 = vst.msk [vmem:[#allocation8 + $0x78] sm:$0xff] %vm1623, %v1540
    %1640 = vst.msk [vmem:[#allocation8 + $0x80] sm:$0xff] %vm1623, %v1545
    %1641 = vst.msk [vmem:[#allocation8 + $0x88] sm:$0xff] %vm1623, %v1550
    %1642 = vst.msk [vmem:[#allocation8 + $0x90] sm:$0xff] %vm1623, %v1555
    %1643 = vst.msk [vmem:[#allocation8 + $0x98] sm:$0xff] %vm1623, %v1560
    %1644 = vst.msk [vmem:[#allocation8 + $0xa0] sm:$0xff] %vm1623, %v1565
    %1645 = vst.msk [vmem:[#allocation8 + $0xa8] sm:$0xff] %vm1623, %v1570
    %1646 = vst.msk [vmem:[#allocation8 + $0xb0] sm:$0xff] %vm1623, %v1575
    %1647 = vst.msk [vmem:[#allocation8 + $0xb8] sm:$0xff] %vm1623, %v1580
    %1648 = vst.msk [vmem:[#allocation8 + $0xc0] sm:$0xff] %vm1623, %v1585
    %1649 = vst.msk [vmem:[#allocation8 + $0xc8] sm:$0xff] %vm1623, %v1590
    %1650 = vst.msk [vmem:[#allocation8 + $0xd0] sm:$0xff] %vm1623, %v1595
    %1651 = vst.msk [vmem:[#allocation8 + $0xd8] sm:$0xff] %vm1623, %v1600
    %1652 = vst.msk [vmem:[#allocation8 + $0xe0] sm:$0xff] %vm1623, %v1605
    %1653 = vst.msk [vmem:[#allocation8 + $0xe8] sm:$0xff] %vm1623, %v1610
    %1654 = vst.msk [vmem:[#allocation8 + $0xf0] sm:$0xff] %vm1623, %v1615
    %1655 = vst.msk [vmem:[#allocation8 + $0xf8] sm:$0xff] %vm1623, %v1620
    // Predicated region
    $region26: #{tpu_custom_call.1} parent=1 // pred_check
      _
    $region27: #{tpu_custom_call.1} parent=1 // pred_check_branch
      %1657 = sbr.rel (0) target = $region29
    $region28: #{tpu_custom_call.1} parent=1 // pred_region
      %s1659 = ssub.s32 4096, 4096
      %1660 = vsyncadd [#allocation4], %s1659
      %s1661 = sshll.u32 [#allocation8], 4
      %s1662 = int_to_ptr.vmem [resolvable:$true] %s1661
      %1667 = dma.vmem_to_hbm [thread:$0]  %s1662, 4096, %s3, [#allocation4], 128, 128, 8
    $region29: #{tpu_custom_call.1} parent=1 // pred_fallthru
      _
    // Predicated region
    $region30: #{tpu_custom_call.1} parent=1 // pred_check
      _
    $region31: #{tpu_custom_call.1} parent=1 // pred_check_branch
      %1669 = sbr.rel (0) target = $region33
    $region32: #{tpu_custom_call.1} parent=1 // pred_region
      %1670 = dma.done [#allocation4], 4096
    $region33: #{tpu_custom_call.1} parent=1 // pred_fallthru
      _
    %1671 = vsyncpa [#allocation3], 1
    %1672 = vsyncpa [#allocation6], 1
    %1673 = vsyncpa [#allocation4], 1

</llo_original>
